<compile_context>
chip_gen: v7x
topology: tpu7x:2x2x1
jax: 0.10.0
libtpu: 0.0.40
codegen_flags: <defaults>
</compile_context>

<pallas_src>
import jax
import jax.numpy as jnp
from jax.experimental import pallas as pl
from jax.experimental.pallas import tpu as pltpu


_INV_SQRT2 = 0.7071067811865476  # 1 / sqrt(2)
_LN_EPS = 1e-12


def _epilogue(h, aux, w2, l_pad):
    """GeLU(exact erf) -> LayerNorm(eps=1e-12, biased var) -> Linear-2 (+b2), all in f32.

    aux row 0 = b1 (already added into h by the caller), row 1 = gamma, row 2 = beta,
    row 3[:l_pad] = b2 (zero-padded to the padded label width).
    """
    g = 0.5 * h * (1.0 + jax.lax.erf(h * jnp.float32(_INV_SQRT2)))
    mean = jnp.mean(g, axis=-1, keepdims=True)
    centered = g - mean
    var = jnp.mean(centered * centered, axis=-1, keepdims=True)
    ln = centered * jax.lax.rsqrt(var + jnp.float32(_LN_EPS)) * aux[1:2, :] + aux[2:3, :]
    return jnp.dot(ln, w2, preferred_element_type=jnp.float32) + aux[3:4, :l_pad]


def _fused_kernel(x_ref, w1_ref, aux_ref, w2_ref, o_ref):
    """Single-K-step fast path.  Grid = (batch_tiles,); w1/aux/w2 are resident.

    x_ref   : (tm, H)      bf16
    w1_ref  : (H, 2H)      bf16 (resident, DMA'd once)
    aux_ref : (8, 2H)      f32
    w2_ref  : (2H, L_pad)  f32
    o_ref   : (tm, L_pad)  f32
    """
    aux = aux_ref[...]
    h = jnp.dot(x_ref[...], w1_ref[...], preferred_element_type=jnp.float32) + aux[0:1, :]
    o_ref[...] = _epilogue(h, aux, w2_ref[...], o_ref.shape[-1]).astype(o_ref.dtype)


def _streamed_kernel(x_ref, w1_ref, aux_ref, w2_ref, o_ref, acc_ref):
    """Huge-H fallback.  Grid = (batch_tiles, k_tiles); w1 is streamed, f32 accumulator.

    x_ref   : (tm, tk)     bf16
    w1_ref  : (tk, 2H)     bf16 (streamed tile)
    acc_ref : (tm, 2H)     f32 persistent accumulator
    """
    k = pl.program_id(1)

    @pl.when(k == 0)
    def _init():
        acc_ref[...] = jnp.zeros_like(acc_ref)

    acc_ref[...] += jnp.dot(x_ref[...], w1_ref[...], preferred_element_type=jnp.float32)

    @pl.when(k == pl.num_programs(1) - 1)
    def _finalize():
        aux = aux_ref[...]
        h = acc_ref[...] + aux[0:1, :]
        o_ref[...] = _epilogue(h, aux, w2_ref[...], o_ref.shape[-1]).astype(o_ref.dtype)


def _usable_vmem_bytes():
    """Generation-aware VMEM budget: ~80% of the per-core capacity (headroom for the
    compiler's own scratch / semaphores).  Falls back to a conservative v7x value."""
    cap = 64 * 2**20
    try:
        info = pltpu.get_tpu_info()
        cap = int(getattr(info, "vmem_capacity_bytes", cap) or cap)
    except Exception:
        pass
    return int(cap * 0.8)


def vision_tapas_classification_head(pooled_output, params, *, force_streaming=False):
    """params: dict with w1 (H, 2H), b1 (1, 2H), gamma (1, 2H), beta (1, 2H),
    w2 (2H, L), b2 (1, L).  Weights may be any float dtype; w1 and the activations are
    used as bf16 (documented bandwidth/accuracy tradeoff), everything else stays f32."""
    B, H = pooled_output.shape
    H2 = params["w1"].shape[1]
    L = params["w2"].shape[1]
    L_pad = -(-L // 128) * 128
    assert L_pad <= H2, "num_labels (padded to 128 lanes) must fit in 2*hidden_size"

    x = pooled_output.astype(jnp.bfloat16)       # bf16 activations: half the x DMA bytes
    w1 = params["w1"].astype(jnp.bfloat16)       # bf16 big weight: half the dominant DMA
    # w2 / b2: pad the label (lane) dim to 128 so the output store is unmasked.
    w2 = jnp.zeros((H2, L_pad), jnp.float32)
    w2 = w2.at[:, :L].set(params["w2"].astype(jnp.float32))

    # Coalesce the tiny per-feature vectors into one (8, 2H) operand.
    aux = jnp.zeros((8, H2), jnp.float32)
    aux = aux.at[0, :].set(params["b1"].reshape(-1).astype(jnp.float32))
    aux = aux.at[1, :].set(params["gamma"].reshape(-1).astype(jnp.float32))
    aux = aux.at[2, :].set(params["beta"].reshape(-1).astype(jnp.float32))
    aux = aux.at[3, :L].set(params["b2"].reshape(-1).astype(jnp.float32))

    usable = _usable_vmem_bytes()
    B8 = max(8, -(-B // 8) * 8)

    def fused_bytes(tm):
        return (2 * tm * H * 2           # x tiles (bf16, double-buffered)
                + 2 * H * H2 * 2         # resident w1 (bf16; budget 2 buffers)
                + 2 * 8 * H2 * 4         # aux
                + 2 * H2 * L_pad * 4     # w2
                + 2 * tm * L_pad * 4     # out tiles
                + 4 * tm * H2 * 4)       # live f32 epilogue temporaries

    def stream_bytes(tm, tk):
        return (2 * tm * tk * 2          # x tiles (bf16)
                + 2 * tk * H2 * 2        # streamed w1 tiles (bf16)
                + 2 * 8 * H2 * 4         # aux
                + 2 * H2 * L_pad * 4     # w2
                + 2 * tm * L_pad * 4     # out tiles
                + tm * H2 * 4            # persistent accumulator
                + 4 * tm * H2 * 4)       # epilogue temporaries (last K step)

    # Batch-tile candidates, largest first (a tile never larger than the padded batch).
    tm_options = ([B8] if B8 <= 256 else []) + [t for t in (256, 128, 64, 32, 16, 8) if t < B8]

    plan = None
    if not force_streaming:
        for tm_c in tm_options:
            if fused_bytes(tm_c) <= usable:
                plan = ("fused", tm_c, H)
                break
    if plan is None:
        tk_c = next((c for c in (512, 256, 128) if H % c == 0), H)
        for tm_c in tm_options:
            if stream_bytes(tm_c, tk_c) <= usable:
                plan = ("stream", tm_c, tk_c)
                break
        if plan is None:  # best effort at monster shapes
            plan = ("stream", tm_options[-1], tk_c)

    mode, tm, tk = plan
    B_pad = -(-B8 // tm) * tm
    if B_pad != B:
        x = jnp.pad(x, ((0, B_pad - B), (0, 0)))
    num_m = B_pad // tm

    if mode == "fused":
        needed = fused_bytes(tm)
        grid_spec = pltpu.PrefetchScalarGridSpec(
            num_scalar_prefetch=0,
            grid=(num_m,),
            in_specs=[
                pl.BlockSpec((tm, H), lambda i: (i, 0)),       # x tile
                pl.BlockSpec((H, H2), lambda i: (0, 0)),       # w1: resident, DMA'd once
                pl.BlockSpec((8, H2), lambda i: (0, 0)),       # aux: resident
                pl.BlockSpec((H2, L_pad), lambda i: (0, 0)),   # w2: resident
            ],
            out_specs=pl.BlockSpec((tm, L_pad), lambda i: (i, 0)),
        )
        kernel = _fused_kernel
        dims = ("parallel",)
    else:
        needed = stream_bytes(tm, tk)
        num_k = H // tk
        grid_spec = pltpu.PrefetchScalarGridSpec(
            num_scalar_prefetch=0,
            grid=(num_m, num_k),
            in_specs=[
                pl.BlockSpec((tm, tk), lambda i, k: (i, k)),      # x tile
                pl.BlockSpec((tk, H2), lambda i, k: (k, 0)),      # w1 tile (streamed)
                pl.BlockSpec((8, H2), lambda i, k: (0, 0)),       # aux: resident
                pl.BlockSpec((H2, L_pad), lambda i, k: (0, 0)),   # w2: resident
            ],
            out_specs=pl.BlockSpec((tm, L_pad), lambda i, k: (i, 0)),
            scratch_shapes=[pltpu.VMEM((tm, H2), jnp.float32)],
        )
        kernel = _streamed_kernel
        dims = ("parallel", "arbitrary")

    vmem_limit = int(max(16 * 2**20, min(needed + (4 << 20), usable)))

    out = pl.pallas_call(
        kernel,
        out_shape=jax.ShapeDtypeStruct((B_pad, L_pad), jnp.float32),
        grid_spec=grid_spec,
        compiler_params=pltpu.CompilerParams(
            dimension_semantics=dims,
            vmem_limit_bytes=vmem_limit,
        ),
    )(x, w1, aux, w2)

    return out[:B, :L]


def _reference(pooled_output, params):
    """Pure-JAX reference using the same bf16 x / bf16 w1 (so tolerances stay tight)."""
    xb = pooled_output.astype(jnp.bfloat16)
    w1 = params["w1"].astype(jnp.bfloat16)
    h = jnp.dot(xb, w1, preferred_element_type=jnp.float32) + params["b1"]
    g = 0.5 * h * (1.0 + jax.lax.erf(h * jnp.float32(_INV_SQRT2)))
    mean = jnp.mean(g, axis=-1, keepdims=True)
    var = jnp.mean((g - mean) ** 2, axis=-1, keepdims=True)
    ln = (g - mean) * jax.lax.rsqrt(var + _LN_EPS) * params["gamma"] + params["beta"]
    return jnp.dot(ln, params["w2"].astype(jnp.float32),
                   preferred_element_type=jnp.float32) + params["b2"]


def init_params(key, hidden_size, num_labels):
    H, L = hidden_size, num_labels
    k1, k2, k3, k4 = jax.random.split(key, 4)
    return {
        # stored as (in, out) — transpose of torch's nn.Linear weight
        "w1": jax.random.normal(k1, (H, 2 * H), jnp.float32) * 0.02,
        "b1": jax.random.normal(k2, (1, 2 * H), jnp.float32) * 0.02,
        "gamma": jnp.ones((1, 2 * H), jnp.float32),
        "beta": jnp.zeros((1, 2 * H), jnp.float32),
        "w2": jax.random.normal(k3, (2 * H, L), jnp.float32) * 0.02,
        "b2": jax.random.normal(k4, (1, L), jnp.float32) * 0.02,
    }


if __name__ == "__main__":
    key = jax.random.PRNGKey(0)
    k_x, k_p = jax.random.split(key)

    # Small but non-trivial shapes: batch padding (3 -> 8 rows), 2H = 768 lane-aligned,
    # label padding (10 -> 128 lanes).
    batch, hidden_size, num_labels = 3, 384, 10
    pooled_output = jax.random.normal(k_x, (batch, hidden_size), jnp.float32)
    params = init_params(k_p, hidden_size, num_labels)

    ref = _reference(pooled_output, params)

    # Default (fused, resident-w1) path.
    out = jax.block_until_ready(vision_tapas_classification_head(pooled_output, params))
    assert out.shape == (batch, num_labels)
    max_err = float(jnp.max(jnp.abs(out - ref)))
    assert jnp.allclose(out, ref, atol=1e-2, rtol=1e-2), f"fused max abs err = {max_err}"

    # Also exercise the huge-H streaming fallback (384 / 128 = 3 K-steps of accumulation).
    out_s = jax.block_until_ready(
        vision_tapas_classification_head(pooled_output, params, force_streaming=True))
    max_err_s = float(jnp.max(jnp.abs(out_s - ref)))
    assert jnp.allclose(out_s, ref, atol=1e-2, rtol=1e-2), f"stream max abs err = {max_err_s}"

    print("KERNEL_OK")
</pallas_src>

<mosaic_0001>
module attributes {stable_mosaic.version = 11 : i64} {
  func.func @_fused_kernel(%arg0: i32, %arg1: memref<8x384xbf16, #tpu.memory_space<vmem>>, %arg2: memref<384x768xbf16, #tpu.memory_space<vmem>>, %arg3: memref<8x768xf32, #tpu.memory_space<vmem>>, %arg4: memref<768x128xf32, #tpu.memory_space<vmem>>, %arg5: memref<8x128xf32, #tpu.memory_space<vmem>>) attributes {dimension_semantics = [#tpu.dimension_semantics<parallel>], iteration_bounds = array<i64: 1>, scalar_prefetch = 0 : i64, scratch_operands = 0 : i64, tpu.core_type = #tpu.core_type<tc>, window_params = [{transform_indices = @transform_0, window_bounds = array<i64: 8, 384>}, {pipeline_mode = #tpu.pipeline_mode<synchronous>, transform_indices = @transform_1, window_bounds = array<i64: 384, 768>}, {pipeline_mode = #tpu.pipeline_mode<synchronous>, transform_indices = @transform_2, window_bounds = array<i64: 8, 768>}, {pipeline_mode = #tpu.pipeline_mode<synchronous>, transform_indices = @transform_3, window_bounds = array<i64: 768, 128>}, {transform_indices = @transform_4, window_bounds = array<i64: 8, 128>}]} {
    %c0 = arith.constant 0 : index
    %c0_0 = arith.constant 0 : index
    %0 = vector.load %arg3[%c0, %c0_0] : memref<8x768xf32, #tpu.memory_space<vmem>>, vector<8x768xf32>
    %c0_1 = arith.constant 0 : index
    %c0_2 = arith.constant 0 : index
    %1 = vector.load %arg1[%c0_1, %c0_2] : memref<8x384xbf16, #tpu.memory_space<vmem>>, vector<8x384xbf16>
    %c0_3 = arith.constant 0 : index
    %c0_4 = arith.constant 0 : index
    %2 = vector.load %arg2[%c0_3, %c0_4] : memref<384x768xbf16, #tpu.memory_space<vmem>>, vector<384x768xbf16>
    %cst = arith.constant dense<0.000000e+00> : vector<8x768xf32>
    %3 = tpu.matmul %1, %2, %cst {dimension_numbers = #tpu.dot_dimension_numbers<[1], [0], [0], [1], [0, 0, 1, 1], [], []>} : vector<8x384xbf16>, vector<384x768xbf16>, vector<8x768xf32> -> vector<8x768xf32>
    %4 = vector.extract_strided_slice %0 {offsets = [0, 0], sizes = [1, 768], strides = [1, 1]} : vector<8x768xf32> to vector<1x768xf32>
    %5 = vector.broadcast %4 : vector<1x768xf32> to vector<8x768xf32>
    %6 = arith.addf %3, %5 : vector<8x768xf32>
    %c0_5 = arith.constant 0 : index
    %c0_6 = arith.constant 0 : index
    %7 = vector.load %arg4[%c0_5, %c0_6] : memref<768x128xf32, #tpu.memory_space<vmem>>, vector<768x128xf32>
    %cst_7 = arith.constant 5.000000e-01 : f32
    %8 = vector.broadcast %cst_7 : f32 to vector<8x768xf32>
    %9 = arith.mulf %8, %6 : vector<8x768xf32>
    %cst_8 = arith.constant 0.707106769 : f32
    %10 = vector.broadcast %cst_8 : f32 to vector<8x768xf32>
    %11 = arith.mulf %6, %10 : vector<8x768xf32>
    %12 = math.erf %11 : vector<8x768xf32>
    %cst_9 = arith.constant 1.000000e+00 : f32
    %13 = vector.broadcast %cst_9 : f32 to vector<8x768xf32>
    %14 = arith.addf %13, %12 : vector<8x768xf32>
    %15 = arith.mulf %9, %14 : vector<8x768xf32>
    %cst_10 = arith.constant dense<0.000000e+00> : vector<8xf32>
    %16 = vector.multi_reduction <add>, %15, %cst_10 [1] : vector<8x768xf32> to vector<8xf32>
    %17 = vector.shape_cast %16 : vector<8xf32> to vector<8x1xf32>
    %cst_11 = arith.constant 7.680000e+02 : f32
    %18 = vector.broadcast %cst_11 : f32 to vector<8x1xf32>
    %19 = arith.divf %17, %18 : vector<8x1xf32>
    %20 = vector.broadcast %19 : vector<8x1xf32> to vector<8x768xf32>
    %21 = arith.subf %15, %20 : vector<8x768xf32>
    %22 = arith.mulf %21, %21 : vector<8x768xf32>
    %cst_12 = arith.constant dense<0.000000e+00> : vector<8xf32>
    %23 = vector.multi_reduction <add>, %22, %cst_12 [1] : vector<8x768xf32> to vector<8xf32>
    %24 = vector.shape_cast %23 : vector<8xf32> to vector<8x1xf32>
    %cst_13 = arith.constant 7.680000e+02 : f32
    %25 = vector.broadcast %cst_13 : f32 to vector<8x1xf32>
    %26 = arith.divf %24, %25 : vector<8x1xf32>
    %cst_14 = arith.constant 9.99999996E-13 : f32
    %27 = vector.broadcast %cst_14 : f32 to vector<8x1xf32>
    %28 = arith.addf %26, %27 : vector<8x1xf32>
    %29 = math.rsqrt %28 : vector<8x1xf32>
    %30 = vector.broadcast %29 : vector<8x1xf32> to vector<8x768xf32>
    %31 = arith.mulf %21, %30 : vector<8x768xf32>
    %32 = vector.extract_strided_slice %0 {offsets = [1, 0], sizes = [1, 768], strides = [1, 1]} : vector<8x768xf32> to vector<1x768xf32>
    %33 = vector.broadcast %32 : vector<1x768xf32> to vector<8x768xf32>
    %34 = arith.mulf %31, %33 : vector<8x768xf32>
    %35 = vector.extract_strided_slice %0 {offsets = [2, 0], sizes = [1, 768], strides = [1, 1]} : vector<8x768xf32> to vector<1x768xf32>
    %36 = vector.broadcast %35 : vector<1x768xf32> to vector<8x768xf32>
    %37 = arith.addf %34, %36 : vector<8x768xf32>
    %cst_15 = arith.constant dense<0.000000e+00> : vector<8x128xf32>
    %38 = tpu.matmul %37, %7, %cst_15 {dimension_numbers = #tpu.dot_dimension_numbers<[1], [0], [0], [1], [0, 0, 1, 1], [], []>} : vector<8x768xf32>, vector<768x128xf32>, vector<8x128xf32> -> vector<8x128xf32>
    %39 = vector.extract_strided_slice %0 {offsets = [3, 0], sizes = [1, 128], strides = [1, 1]} : vector<8x768xf32> to vector<1x128xf32>
    %40 = vector.broadcast %39 : vector<1x128xf32> to vector<8x128xf32>
    %41 = arith.addf %38, %40 : vector<8x128xf32>
    %c0_16 = arith.constant 0 : index
    %c0_17 = arith.constant 0 : index
    %42 = vector.load %arg5[%c0_16, %c0_17] : memref<8x128xf32, #tpu.memory_space<vmem>>, vector<8x128xf32>
    tpu.vector_store %arg5[%c0_16, %c0_17], %41 {strides = array<i32>} : memref<8x128xf32, #tpu.memory_space<vmem>>, vector<8x128xf32>,
    return
  }
  func.func @transform_0(%arg0: i32) -> (i32, i32) {
    %c0_i32 = arith.constant 0 : i32
    %c0_i32_0 = arith.constant 0 : i32
    return %arg0, %c0_i32 : i32, i32
  }
  func.func @transform_1(%arg0: i32) -> (i32, i32) {
    %c0_i32 = arith.constant 0 : i32
    %c0_i32_0 = arith.constant 0 : i32
    %c0_i32_1 = arith.constant 0 : i32
    return %c0_i32, %c0_i32_0 : i32, i32
  }
  func.func @transform_2(%arg0: i32) -> (i32, i32) {
    %c0_i32 = arith.constant 0 : i32
    %c0_i32_0 = arith.constant 0 : i32
    %c0_i32_1 = arith.constant 0 : i32
    return %c0_i32, %c0_i32_0 : i32, i32
  }
  func.func @transform_3(%arg0: i32) -> (i32, i32) {
    %c0_i32 = arith.constant 0 : i32
    %c0_i32_0 = arith.constant 0 : i32
    %c0_i32_1 = arith.constant 0 : i32
    return %c0_i32, %c0_i32_0 : i32, i32
  }
  func.func @transform_4(%arg0: i32) -> (i32, i32) {
    %c0_i32 = arith.constant 0 : i32
    %c0_i32_0 = arith.constant 0 : i32
    return %arg0, %c0_i32 : i32, i32
  }
}

</mosaic_0001>

<llo_original>
// kernel: tpu_custom_call.1
$region0: #{tpu_custom_call.1}
  #allocation0 [shape = 'u32[]', space=smem, size = 0x4, offset = 0x4, fixed_abs, tag = 'smem constant byte address 0x4 - core index']
  #allocation1 [shape = 'u32[144,128]{1,0:T(1,128)}', space=vmem, size = 0x12000, scoped, tag = 'internal scratch']
  %s0 = inlined_call_operand.hbm [shape: bf16[8,384], index: 0, kind: input, shape index: {}]
  %s1 = inlined_call_operand.hbm [shape: bf16[384,768], index: 1, kind: input, shape index: {}]
  %s2 = inlined_call_operand.hbm [shape: f32[8,768], index: 2, kind: input, shape index: {}]
  %s3 = inlined_call_operand.hbm [shape: f32[768,128], index: 3, kind: input, shape index: {}]
  %s4 = inlined_call_operand.hbm [shape: f32[8,128], index: 4, kind: output, shape index: {}]
  %s5 = sld [smem:[#allocation0]]
  $region42: #{tpu_custom_call.1} parent=0
    _
  %s7 = ssub.s32 1, %s5
  %s8 = scalar_select 0, %s7, %s5
  $region1: #{tpu_custom_call.1} parent=0
    #allocation2 [shape = 'u8[6144]{0}', space=vmem, size = 0x1800, scoped, tag = 'input window, operand 0, single buffered']
    #allocation3 [shape = 's32[1]{0}', space=sflag, size = 0x4, scoped, tag = 'scoped memory for tpu_custom_call.1']
    #allocation4 [shape = 's32[1]{0}', space=sflag, size = 0x4, scoped, tag = 'scoped memory for tpu_custom_call.1']
    #allocation5 [shape = 'u8[589824]{0}', space=vmem, size = 0x90000, scoped, tag = 'input window, operand 1, single buffered']
    #allocation6 [shape = 's32[1]{0}', space=sflag, size = 0x4, scoped, tag = 'scoped memory for tpu_custom_call.1']
    #allocation7 [shape = 'u8[24576]{0}', space=vmem, size = 0x6000, scoped, tag = 'input window, operand 2, single buffered']
    #allocation8 [shape = 'u8[393216]{0}', space=vmem, size = 0x60000, scoped, tag = 'input window, operand 3, single buffered']
    #allocation9 [shape = 's32[1]{0}', space=sflag, size = 0x4, scoped, tag = 'scoped memory for tpu_custom_call.1']
    #allocation10 [shape = 'u8[4096]{0}', space=vmem, size = 0x1000, scoped, tag = 'output window, operand 0, single buffered']
    %9 = vsyncpa [#allocation3], 0
    %10 = vsyncpa [#allocation6], 0
    %11 = vsyncpa [#allocation9], 0
    %12 = vsyncpa [#allocation4], 0
    // Predicated region
    $region2: #{tpu_custom_call.1} parent=1 // pred_check
      _
    $region3: #{tpu_custom_call.1} parent=1 // pred_check_branch
      %14 = sbr.rel (0) target = $region5
    $region4: #{tpu_custom_call.1} parent=1 // pred_region
      %s16 = ssub.s32 192, 192
      %17 = vsyncadd [#allocation3], %s16
      %s19 = sshll.u32 [#allocation2], 4
      %s20 = int_to_ptr.vmem [resolvable:$true] %s19
      %22 = dma.hbm_to_vmem [thread:$0]  %s0, 192, %s20, [#allocation3]
    $region5: #{tpu_custom_call.1} parent=1 // pred_fallthru
      _
    // Predicated region
    $region6: #{tpu_custom_call.1} parent=1 // pred_check
      _
    $region7: #{tpu_custom_call.1} parent=1 // pred_check_branch
      %24 = sbr.rel (0) target = $region9
    $region8: #{tpu_custom_call.1} parent=1 // pred_region
      %s26 = ssub.s32 18432, 18432
      %27 = vsyncadd [#allocation6], %s26
      %s28 = sshll.u32 [#allocation5], 4
      %s29 = int_to_ptr.vmem [resolvable:$true] %s28
      %34 = dma.hbm_to_vmem [thread:$0]  %s1, 18432, %s29, [#allocation6], 384, 384, 24
    $region9: #{tpu_custom_call.1} parent=1 // pred_fallthru
      _
    // Predicated region
    $region10: #{tpu_custom_call.1} parent=1 // pred_check
      _
    $region11: #{tpu_custom_call.1} parent=1 // pred_check_branch
      %36 = sbr.rel (0) target = $region13
    $region12: #{tpu_custom_call.1} parent=1 // pred_region
      %s38 = ssub.s32 768, 768
      %39 = vsyncadd [#allocation6], %s38
      %s41 = sshll.u32 [#allocation7], 4
      %s42 = int_to_ptr.vmem [resolvable:$true] %s41
      %44 = dma.hbm_to_vmem [thread:$0]  %s2, 768, %s42, [#allocation6]
    $region13: #{tpu_custom_call.1} parent=1 // pred_fallthru
      _
    // Predicated region
    $region14: #{tpu_custom_call.1} parent=1 // pred_check
      _
    $region15: #{tpu_custom_call.1} parent=1 // pred_check_branch
      %46 = sbr.rel (0) target = $region17
    $region16: #{tpu_custom_call.1} parent=1 // pred_region
      %s48 = ssub.s32 12288, 12288
      %49 = vsyncadd [#allocation9], %s48
      %s50 = sshll.u32 [#allocation8], 4
      %s51 = int_to_ptr.vmem [resolvable:$true] %s50
      %56 = dma.hbm_to_vmem [thread:$0]  %s3, 12288, %s51, [#allocation9], 128, 128, 8
    $region17: #{tpu_custom_call.1} parent=1 // pred_fallthru
      _
    // Predicated region
    $region18: #{tpu_custom_call.1} parent=1 // pred_check
      _
    $region19: #{tpu_custom_call.1} parent=1 // pred_check_branch
      %58 = sbr.rel (0) target = $region21
    $region20: #{tpu_custom_call.1} parent=1 // pred_region
      %59 = dma.done [#allocation3], 192
    $region21: #{tpu_custom_call.1} parent=1 // pred_fallthru
      _
    // Predicated region
    $region22: #{tpu_custom_call.1} parent=1 // pred_check
      _
    $region23: #{tpu_custom_call.1} parent=1 // pred_check_branch
      %61 = sbr.rel (0) target = $region25
    $region24: #{tpu_custom_call.1} parent=1 // pred_region
      %62 = dma.done [#allocation6], 18432
    $region25: #{tpu_custom_call.1} parent=1 // pred_fallthru
      _
    // Predicated region
    $region26: #{tpu_custom_call.1} parent=1 // pred_check
      _
    $region27: #{tpu_custom_call.1} parent=1 // pred_check_branch
      %64 = sbr.rel (0) target = $region29
    $region28: #{tpu_custom_call.1} parent=1 // pred_region
      %65 = dma.done [#allocation6], 768
    $region29: #{tpu_custom_call.1} parent=1 // pred_fallthru
      _
    // Predicated region
    $region30: #{tpu_custom_call.1} parent=1 // pred_check
      _
    $region31: #{tpu_custom_call.1} parent=1 // pred_check_branch
      %67 = sbr.rel (0) target = $region33
    $region32: #{tpu_custom_call.1} parent=1 // pred_region
      %68 = dma.done [#allocation9], 12288
    $region33: #{tpu_custom_call.1} parent=1 // pred_fallthru
      _
    %v70 = vld [vmem:[#allocation7] sm:$0xff]
    %v71 = vld [vmem:[#allocation7 + $0x8] sm:$0xff]
    %v72 = vld [vmem:[#allocation7 + $0x10] sm:$0xff]
    %v73 = vld [vmem:[#allocation7 + $0x18] sm:$0xff]
    %v74 = vld [vmem:[#allocation7 + $0x20] sm:$0xff]
    %v75 = vld [vmem:[#allocation7 + $0x28] sm:$0xff]
    %v76 = vld [vmem:[#allocation2] sm:$0xff]
    %v77 = vld [vmem:[#allocation2 + $0x8] sm:$0xf]
    %v78 = vld [vmem:[#allocation5] sm:$0xff]
    %v79 = vld [vmem:[#allocation5 + $0x8] sm:$0xff]
    %v80 = vld [vmem:[#allocation5 + $0x10] sm:$0xff]
    %v81 = vld [vmem:[#allocation5 + $0x18] sm:$0xff]
    %v82 = vld [vmem:[#allocation5 + $0x20] sm:$0xff]
    %v83 = vld [vmem:[#allocation5 + $0x28] sm:$0xff]
    %v84 = vld [vmem:[#allocation5 + $0x30] sm:$0xff]
    %v85 = vld [vmem:[#allocation5 + $0x38] sm:$0xff]
    %v86 = vld [vmem:[#allocation5 + $0x40] sm:$0xff]
    %v87 = vld [vmem:[#allocation5 + $0x48] sm:$0xff]
    %v88 = vld [vmem:[#allocation5 + $0x50] sm:$0xff]
    %v89 = vld [vmem:[#allocation5 + $0x58] sm:$0xff]
    %v90 = vld [vmem:[#allocation5 + $0x60] sm:$0xff]
    %v91 = vld [vmem:[#allocation5 + $0x68] sm:$0xff]
    %v92 = vld [vmem:[#allocation5 + $0x70] sm:$0xff]
    %v93 = vld [vmem:[#allocation5 + $0x78] sm:$0xff]
    %v94 = vld [vmem:[#allocation5 + $0x80] sm:$0xff]
    %v95 = vld [vmem:[#allocation5 + $0x88] sm:$0xff]
    %v96 = vld [vmem:[#allocation5 + $0x90] sm:$0xff]
    %v97 = vld [vmem:[#allocation5 + $0x98] sm:$0xff]
    %v98 = vld [vmem:[#allocation5 + $0xa0] sm:$0xff]
    %v99 = vld [vmem:[#allocation5 + $0xa8] sm:$0xff]
    %v100 = vld [vmem:[#allocation5 + $0xb0] sm:$0xff]
    %v101 = vld [vmem:[#allocation5 + $0xb8] sm:$0xff]
    %v102 = vld [vmem:[#allocation5 + $0xc0] sm:$0xff]
    %v103 = vld [vmem:[#allocation5 + $0xc8] sm:$0xff]
    %v104 = vld [vmem:[#allocation5 + $0xd0] sm:$0xff]
    %v105 = vld [vmem:[#allocation5 + $0xd8] sm:$0xff]
    %v106 = vld [vmem:[#allocation5 + $0xe0] sm:$0xff]
    %v107 = vld [vmem:[#allocation5 + $0xe8] sm:$0xff]
    %v108 = vld [vmem:[#allocation5 + $0xf0] sm:$0xff]
    %v109 = vld [vmem:[#allocation5 + $0xf8] sm:$0xff]
    %v110 = vld [vmem:[#allocation5 + $0x100] sm:$0xff]
    %v111 = vld [vmem:[#allocation5 + $0x108] sm:$0xff]
    %v112 = vld [vmem:[#allocation5 + $0x110] sm:$0xff]
    %v113 = vld [vmem:[#allocation5 + $0x118] sm:$0xff]
    %v114 = vld [vmem:[#allocation5 + $0x120] sm:$0xff]
    %v115 = vld [vmem:[#allocation5 + $0x128] sm:$0xff]
    %v116 = vld [vmem:[#allocation5 + $0x130] sm:$0xff]
    %v117 = vld [vmem:[#allocation5 + $0x138] sm:$0xff]
    %v118 = vld [vmem:[#allocation5 + $0x140] sm:$0xff]
    %v119 = vld [vmem:[#allocation5 + $0x148] sm:$0xff]
    %v120 = vld [vmem:[#allocation5 + $0x150] sm:$0xff]
    %v121 = vld [vmem:[#allocation5 + $0x158] sm:$0xff]
    %v122 = vld [vmem:[#allocation5 + $0x160] sm:$0xff]
    %v123 = vld [vmem:[#allocation5 + $0x168] sm:$0xff]
    %v124 = vld [vmem:[#allocation5 + $0x170] sm:$0xff]
    %v125 = vld [vmem:[#allocation5 + $0x178] sm:$0xff]
    %v126 = vld [vmem:[#allocation5 + $0x180] sm:$0xff]
    %v127 = vld [vmem:[#allocation5 + $0x188] sm:$0xff]
    %v128 = vld [vmem:[#allocation5 + $0x190] sm:$0xff]
    %v129 = vld [vmem:[#allocation5 + $0x198] sm:$0xff]
    %v130 = vld [vmem:[#allocation5 + $0x1a0] sm:$0xff]
    %v131 = vld [vmem:[#allocation5 + $0x1a8] sm:$0xff]
    %v132 = vld [vmem:[#allocation5 + $0x1b0] sm:$0xff]
    %v133 = vld [vmem:[#allocation5 + $0x1b8] sm:$0xff]
    %v134 = vld [vmem:[#allocation5 + $0x1c0] sm:$0xff]
    %v135 = vld [vmem:[#allocation5 + $0x1c8] sm:$0xff]
    %v136 = vld [vmem:[#allocation5 + $0x1d0] sm:$0xff]
    %v137 = vld [vmem:[#allocation5 + $0x1d8] sm:$0xff]
    %v138 = vld [vmem:[#allocation5 + $0x1e0] sm:$0xff]
    %v139 = vld [vmem:[#allocation5 + $0x1e8] sm:$0xff]
    %v140 = vld [vmem:[#allocation5 + $0x1f0] sm:$0xff]
    %v141 = vld [vmem:[#allocation5 + $0x1f8] sm:$0xff]
    %v142 = vld [vmem:[#allocation5 + $0x200] sm:$0xff]
    %v143 = vld [vmem:[#allocation5 + $0x208] sm:$0xff]
    %v144 = vld [vmem:[#allocation5 + $0x210] sm:$0xff]
    %v145 = vld [vmem:[#allocation5 + $0x218] sm:$0xff]
    %v146 = vld [vmem:[#allocation5 + $0x220] sm:$0xff]
    %v147 = vld [vmem:[#allocation5 + $0x228] sm:$0xff]
    %v148 = vld [vmem:[#allocation5 + $0x230] sm:$0xff]
    %v149 = vld [vmem:[#allocation5 + $0x238] sm:$0xff]
    %v150 = vld [vmem:[#allocation5 + $0x240] sm:$0xff]
    %v151 = vld [vmem:[#allocation5 + $0x248] sm:$0xff]
    %v152 = vld [vmem:[#allocation5 + $0x250] sm:$0xff]
    %v153 = vld [vmem:[#allocation5 + $0x258] sm:$0xff]
    %v154 = vld [vmem:[#allocation5 + $0x260] sm:$0xff]
    %v155 = vld [vmem:[#allocation5 + $0x268] sm:$0xff]
    %v156 = vld [vmem:[#allocation5 + $0x270] sm:$0xff]
    %v157 = vld [vmem:[#allocation5 + $0x278] sm:$0xff]
    %v158 = vld [vmem:[#allocation5 + $0x280] sm:$0xff]
    %v159 = vld [vmem:[#allocation5 + $0x288] sm:$0xff]
    %v160 = vld [vmem:[#allocation5 + $0x290] sm:$0xff]
    %v161 = vld [vmem:[#allocation5 + $0x298] sm:$0xff]
    %v162 = vld [vmem:[#allocation5 + $0x2a0] sm:$0xff]
    %v163 = vld [vmem:[#allocation5 + $0x2a8] sm:$0xff]
    %v164 = vld [vmem:[#allocation5 + $0x2b0] sm:$0xff]
    %v165 = vld [vmem:[#allocation5 + $0x2b8] sm:$0xff]
    %v166 = vld [vmem:[#allocation5 + $0x2c0] sm:$0xff]
    %v167 = vld [vmem:[#allocation5 + $0x2c8] sm:$0xff]
    %v168 = vld [vmem:[#allocation5 + $0x2d0] sm:$0xff]
    %v169 = vld [vmem:[#allocation5 + $0x2d8] sm:$0xff]
    %v170 = vld [vmem:[#allocation5 + $0x2e0] sm:$0xff]
    %v171 = vld [vmem:[#allocation5 + $0x2e8] sm:$0xff]
    %v172 = vld [vmem:[#allocation5 + $0x2f0] sm:$0xff]
    %v173 = vld [vmem:[#allocation5 + $0x2f8] sm:$0xff]
    %v174 = vld [vmem:[#allocation5 + $0x300] sm:$0xff]
    %v175 = vld [vmem:[#allocation5 + $0x308] sm:$0xff]
    %v176 = vld [vmem:[#allocation5 + $0x310] sm:$0xff]
    %v177 = vld [vmem:[#allocation5 + $0x318] sm:$0xff]
    %v178 = vld [vmem:[#allocation5 + $0x320] sm:$0xff]
    %v179 = vld [vmem:[#allocation5 + $0x328] sm:$0xff]
    %v180 = vld [vmem:[#allocation5 + $0x330] sm:$0xff]
    %v181 = vld [vmem:[#allocation5 + $0x338] sm:$0xff]
    %v182 = vld [vmem:[#allocation5 + $0x340] sm:$0xff]
    %v183 = vld [vmem:[#allocation5 + $0x348] sm:$0xff]
    %v184 = vld [vmem:[#allocation5 + $0x350] sm:$0xff]
    %v185 = vld [vmem:[#allocation5 + $0x358] sm:$0xff]
    %v186 = vld [vmem:[#allocation5 + $0x360] sm:$0xff]
    %v187 = vld [vmem:[#allocation5 + $0x368] sm:$0xff]
    %v188 = vld [vmem:[#allocation5 + $0x370] sm:$0xff]
    %v189 = vld [vmem:[#allocation5 + $0x378] sm:$0xff]
    %v190 = vld [vmem:[#allocation5 + $0x380] sm:$0xff]
    %v191 = vld [vmem:[#allocation5 + $0x388] sm:$0xff]
    %v192 = vld [vmem:[#allocation5 + $0x390] sm:$0xff]
    %v193 = vld [vmem:[#allocation5 + $0x398] sm:$0xff]
    %v194 = vld [vmem:[#allocation5 + $0x3a0] sm:$0xff]
    %v195 = vld [vmem:[#allocation5 + $0x3a8] sm:$0xff]
    %v196 = vld [vmem:[#allocation5 + $0x3b0] sm:$0xff]
    %v197 = vld [vmem:[#allocation5 + $0x3b8] sm:$0xff]
    %v198 = vld [vmem:[#allocation5 + $0x3c0] sm:$0xff]
    %v199 = vld [vmem:[#allocation5 + $0x3c8] sm:$0xff]
    %v200 = vld [vmem:[#allocation5 + $0x3d0] sm:$0xff]
    %v201 = vld [vmem:[#allocation5 + $0x3d8] sm:$0xff]
    %v202 = vld [vmem:[#allocation5 + $0x3e0] sm:$0xff]
    %v203 = vld [vmem:[#allocation5 + $0x3e8] sm:$0xff]
    %v204 = vld [vmem:[#allocation5 + $0x3f0] sm:$0xff]
    %v205 = vld [vmem:[#allocation5 + $0x3f8] sm:$0xff]
    %v206 = vld [vmem:[#allocation5 + $0x400] sm:$0xff]
    %v207 = vld [vmem:[#allocation5 + $0x408] sm:$0xff]
    %v208 = vld [vmem:[#allocation5 + $0x410] sm:$0xff]
    %v209 = vld [vmem:[#allocation5 + $0x418] sm:$0xff]
    %v210 = vld [vmem:[#allocation5 + $0x420] sm:$0xff]
    %v211 = vld [vmem:[#allocation5 + $0x428] sm:$0xff]
    %v212 = vld [vmem:[#allocation5 + $0x430] sm:$0xff]
    %v213 = vld [vmem:[#allocation5 + $0x438] sm:$0xff]
    %v214 = vld [vmem:[#allocation5 + $0x440] sm:$0xff]
    %v215 = vld [vmem:[#allocation5 + $0x448] sm:$0xff]
    %v216 = vld [vmem:[#allocation5 + $0x450] sm:$0xff]
    %v217 = vld [vmem:[#allocation5 + $0x458] sm:$0xff]
    %v218 = vld [vmem:[#allocation5 + $0x460] sm:$0xff]
    %v219 = vld [vmem:[#allocation5 + $0x468] sm:$0xff]
    %v220 = vld [vmem:[#allocation5 + $0x470] sm:$0xff]
    %v221 = vld [vmem:[#allocation5 + $0x478] sm:$0xff]
    %v222 = vlaneseq
    %v223 = vshrl.u32 %v222, 7
    %v224 = vsub.s32 0, %v223
    %v225 = vrot.slane %v70, %v224
    %v226 = vlaneseq
    %v227 = vshrl.u32 %v226, 7
    %v228 = vsub.s32 0, %v227
    %v229 = vrot.slane %v71, %v228
    %v230 = vlaneseq
    %v231 = vshrl.u32 %v230, 7
    %v232 = vsub.s32 0, %v231
    %v233 = vrot.slane %v72, %v232
    %v234 = vlaneseq
    %v235 = vshrl.u32 %v234, 7
    %v236 = vsub.s32 0, %v235
    %v237 = vrot.slane %v73, %v236
    %v238 = vlaneseq
    %v239 = vshrl.u32 %v238, 7
    %v240 = vsub.s32 0, %v239
    %v241 = vrot.slane %v74, %v240
    %v242 = vlaneseq
    %v243 = vshrl.u32 %v242, 7
    %v244 = vsub.s32 0, %v243
    %v245 = vrot.slane %v75, %v244
    %v248 = vunpack.c.l.b16 %v76
    %v249 = vunpack.c.h.b16 %v76
    %v250 = vunpack.c.l.b16 %v77
    %v251 = vpack.c.b16 %v248, %v248
    %v252 = vpack.c.b16 %v249, %v249
    %v253 = vpack.c.b16 %v250, %v250
    %v401 = vunpack.c.l.b16 %v78
    %v402 = vunpack.c.h.b16 %v78
    %v403 = vunpack.c.l.b16 %v79
    %v404 = vunpack.c.h.b16 %v79
    %v405 = vunpack.c.l.b16 %v80
    %v406 = vunpack.c.h.b16 %v80
    %v407 = vunpack.c.l.b16 %v81
    %v408 = vunpack.c.h.b16 %v81
    %v409 = vunpack.c.l.b16 %v82
    %v410 = vunpack.c.h.b16 %v82
    %v411 = vunpack.c.l.b16 %v83
    %v412 = vunpack.c.h.b16 %v83
    %v413 = vunpack.c.l.b16 %v84
    %v414 = vunpack.c.h.b16 %v84
    %v415 = vunpack.c.l.b16 %v85
    %v416 = vunpack.c.h.b16 %v85
    %v417 = vunpack.c.l.b16 %v86
    %v418 = vunpack.c.h.b16 %v86
    %v419 = vunpack.c.l.b16 %v87
    %v420 = vunpack.c.h.b16 %v87
    %v421 = vunpack.c.l.b16 %v88
    %v422 = vunpack.c.h.b16 %v88
    %v423 = vunpack.c.l.b16 %v89
    %v424 = vunpack.c.h.b16 %v89
    %v425 = vunpack.c.l.b16 %v90
    %v426 = vunpack.c.h.b16 %v90
    %v427 = vunpack.c.l.b16 %v91
    %v428 = vunpack.c.h.b16 %v91
    %v429 = vunpack.c.l.b16 %v92
    %v430 = vunpack.c.h.b16 %v92
    %v431 = vunpack.c.l.b16 %v93
    %v432 = vunpack.c.h.b16 %v93
    %v433 = vunpack.c.l.b16 %v94
    %v434 = vunpack.c.h.b16 %v94
    %v435 = vunpack.c.l.b16 %v95
    %v436 = vunpack.c.h.b16 %v95
    %v437 = vunpack.c.l.b16 %v96
    %v438 = vunpack.c.h.b16 %v96
    %v439 = vunpack.c.l.b16 %v97
    %v440 = vunpack.c.h.b16 %v97
    %v441 = vunpack.c.l.b16 %v98
    %v442 = vunpack.c.h.b16 %v98
    %v443 = vunpack.c.l.b16 %v99
    %v444 = vunpack.c.h.b16 %v99
    %v445 = vunpack.c.l.b16 %v100
    %v446 = vunpack.c.h.b16 %v100
    %v447 = vunpack.c.l.b16 %v101
    %v448 = vunpack.c.h.b16 %v101
    %v449 = vunpack.c.l.b16 %v102
    %v450 = vunpack.c.h.b16 %v102
    %v451 = vunpack.c.l.b16 %v103
    %v452 = vunpack.c.h.b16 %v103
    %v453 = vunpack.c.l.b16 %v104
    %v454 = vunpack.c.h.b16 %v104
    %v455 = vunpack.c.l.b16 %v105
    %v456 = vunpack.c.h.b16 %v105
    %v457 = vunpack.c.l.b16 %v106
    %v458 = vunpack.c.h.b16 %v106
    %v459 = vunpack.c.l.b16 %v107
    %v460 = vunpack.c.h.b16 %v107
    %v461 = vunpack.c.l.b16 %v108
    %v462 = vunpack.c.h.b16 %v108
    %v463 = vunpack.c.l.b16 %v109
    %v464 = vunpack.c.h.b16 %v109
    %v465 = vunpack.c.l.b16 %v110
    %v466 = vunpack.c.h.b16 %v110
    %v467 = vunpack.c.l.b16 %v111
    %v468 = vunpack.c.h.b16 %v111
    %v469 = vunpack.c.l.b16 %v112
    %v470 = vunpack.c.h.b16 %v112
    %v471 = vunpack.c.l.b16 %v113
    %v472 = vunpack.c.h.b16 %v113
    %v473 = vunpack.c.l.b16 %v114
    %v474 = vunpack.c.h.b16 %v114
    %v475 = vunpack.c.l.b16 %v115
    %v476 = vunpack.c.h.b16 %v115
    %v477 = vunpack.c.l.b16 %v116
    %v478 = vunpack.c.h.b16 %v116
    %v479 = vunpack.c.l.b16 %v117
    %v480 = vunpack.c.h.b16 %v117
    %v481 = vunpack.c.l.b16 %v118
    %v482 = vunpack.c.h.b16 %v118
    %v483 = vunpack.c.l.b16 %v119
    %v484 = vunpack.c.h.b16 %v119
    %v485 = vunpack.c.l.b16 %v120
    %v486 = vunpack.c.h.b16 %v120
    %v487 = vunpack.c.l.b16 %v121
    %v488 = vunpack.c.h.b16 %v121
    %v489 = vunpack.c.l.b16 %v122
    %v490 = vunpack.c.h.b16 %v122
    %v491 = vunpack.c.l.b16 %v123
    %v492 = vunpack.c.h.b16 %v123
    %v493 = vunpack.c.l.b16 %v124
    %v494 = vunpack.c.h.b16 %v124
    %v495 = vunpack.c.l.b16 %v125
    %v496 = vunpack.c.h.b16 %v125
    %v497 = vunpack.c.l.b16 %v126
    %v498 = vunpack.c.h.b16 %v126
    %v499 = vunpack.c.l.b16 %v127
    %v500 = vunpack.c.h.b16 %v127
    %v501 = vunpack.c.l.b16 %v128
    %v502 = vunpack.c.h.b16 %v128
    %v503 = vunpack.c.l.b16 %v129
    %v504 = vunpack.c.h.b16 %v129
    %v505 = vunpack.c.l.b16 %v130
    %v506 = vunpack.c.h.b16 %v130
    %v507 = vunpack.c.l.b16 %v131
    %v508 = vunpack.c.h.b16 %v131
    %v509 = vunpack.c.l.b16 %v132
    %v510 = vunpack.c.h.b16 %v132
    %v511 = vunpack.c.l.b16 %v133
    %v512 = vunpack.c.h.b16 %v133
    %v513 = vunpack.c.l.b16 %v134
    %v514 = vunpack.c.h.b16 %v134
    %v515 = vunpack.c.l.b16 %v135
    %v516 = vunpack.c.h.b16 %v135
    %v517 = vunpack.c.l.b16 %v136
    %v518 = vunpack.c.h.b16 %v136
    %v519 = vunpack.c.l.b16 %v137
    %v520 = vunpack.c.h.b16 %v137
    %v521 = vunpack.c.l.b16 %v138
    %v522 = vunpack.c.h.b16 %v138
    %v523 = vunpack.c.l.b16 %v139
    %v524 = vunpack.c.h.b16 %v139
    %v525 = vunpack.c.l.b16 %v140
    %v526 = vunpack.c.h.b16 %v140
    %v527 = vunpack.c.l.b16 %v141
    %v528 = vunpack.c.h.b16 %v141
    %v529 = vunpack.c.l.b16 %v142
    %v530 = vunpack.c.h.b16 %v142
    %v531 = vunpack.c.l.b16 %v143
    %v532 = vunpack.c.h.b16 %v143
    %v533 = vunpack.c.l.b16 %v144
    %v534 = vunpack.c.h.b16 %v144
    %v535 = vunpack.c.l.b16 %v145
    %v536 = vunpack.c.h.b16 %v145
    %v537 = vunpack.c.l.b16 %v146
    %v538 = vunpack.c.h.b16 %v146
    %v539 = vunpack.c.l.b16 %v147
    %v540 = vunpack.c.h.b16 %v147
    %v541 = vunpack.c.l.b16 %v148
    %v542 = vunpack.c.h.b16 %v148
    %v543 = vunpack.c.l.b16 %v149
    %v544 = vunpack.c.h.b16 %v149
    %v545 = vunpack.c.l.b16 %v150
    %v546 = vunpack.c.h.b16 %v150
    %v547 = vunpack.c.l.b16 %v151
    %v548 = vunpack.c.h.b16 %v151
    %v549 = vunpack.c.l.b16 %v152
    %v550 = vunpack.c.h.b16 %v152
    %v551 = vunpack.c.l.b16 %v153
    %v552 = vunpack.c.h.b16 %v153
    %v553 = vunpack.c.l.b16 %v154
    %v554 = vunpack.c.h.b16 %v154
    %v555 = vunpack.c.l.b16 %v155
    %v556 = vunpack.c.h.b16 %v155
    %v557 = vunpack.c.l.b16 %v156
    %v558 = vunpack.c.h.b16 %v156
    %v559 = vunpack.c.l.b16 %v157
    %v560 = vunpack.c.h.b16 %v157
    %v561 = vunpack.c.l.b16 %v158
    %v562 = vunpack.c.h.b16 %v158
    %v563 = vunpack.c.l.b16 %v159
    %v564 = vunpack.c.h.b16 %v159
    %v565 = vunpack.c.l.b16 %v160
    %v566 = vunpack.c.h.b16 %v160
    %v567 = vunpack.c.l.b16 %v161
    %v568 = vunpack.c.h.b16 %v161
    %v569 = vunpack.c.l.b16 %v162
    %v570 = vunpack.c.h.b16 %v162
    %v571 = vunpack.c.l.b16 %v163
    %v572 = vunpack.c.h.b16 %v163
    %v573 = vunpack.c.l.b16 %v164
    %v574 = vunpack.c.h.b16 %v164
    %v575 = vunpack.c.l.b16 %v165
    %v576 = vunpack.c.h.b16 %v165
    %v577 = vunpack.c.l.b16 %v166
    %v578 = vunpack.c.h.b16 %v166
    %v579 = vunpack.c.l.b16 %v167
    %v580 = vunpack.c.h.b16 %v167
    %v581 = vunpack.c.l.b16 %v168
    %v582 = vunpack.c.h.b16 %v168
    %v583 = vunpack.c.l.b16 %v169
    %v584 = vunpack.c.h.b16 %v169
    %v585 = vunpack.c.l.b16 %v170
    %v586 = vunpack.c.h.b16 %v170
    %v587 = vunpack.c.l.b16 %v171
    %v588 = vunpack.c.h.b16 %v171
    %v589 = vunpack.c.l.b16 %v172
    %v590 = vunpack.c.h.b16 %v172
    %v591 = vunpack.c.l.b16 %v173
    %v592 = vunpack.c.h.b16 %v173
    %v593 = vunpack.c.l.b16 %v174
    %v594 = vunpack.c.h.b16 %v174
    %v595 = vunpack.c.l.b16 %v175
    %v596 = vunpack.c.h.b16 %v175
    %v597 = vunpack.c.l.b16 %v176
    %v598 = vunpack.c.h.b16 %v176
    %v599 = vunpack.c.l.b16 %v177
    %v600 = vunpack.c.h.b16 %v177
    %v601 = vunpack.c.l.b16 %v178
    %v602 = vunpack.c.h.b16 %v178
    %v603 = vunpack.c.l.b16 %v179
    %v604 = vunpack.c.h.b16 %v179
    %v605 = vunpack.c.l.b16 %v180
    %v606 = vunpack.c.h.b16 %v180
    %v607 = vunpack.c.l.b16 %v181
    %v608 = vunpack.c.h.b16 %v181
    %v609 = vunpack.c.l.b16 %v182
    %v610 = vunpack.c.h.b16 %v182
    %v611 = vunpack.c.l.b16 %v183
    %v612 = vunpack.c.h.b16 %v183
    %v613 = vunpack.c.l.b16 %v184
    %v614 = vunpack.c.h.b16 %v184
    %v615 = vunpack.c.l.b16 %v185
    %v616 = vunpack.c.h.b16 %v185
    %v617 = vunpack.c.l.b16 %v186
    %v618 = vunpack.c.h.b16 %v186
    %v619 = vunpack.c.l.b16 %v187
    %v620 = vunpack.c.h.b16 %v187
    %v621 = vunpack.c.l.b16 %v188
    %v622 = vunpack.c.h.b16 %v188
    %v623 = vunpack.c.l.b16 %v189
    %v624 = vunpack.c.h.b16 %v189
    %v625 = vunpack.c.l.b16 %v190
    %v626 = vunpack.c.h.b16 %v190
    %v627 = vunpack.c.l.b16 %v191
    %v628 = vunpack.c.h.b16 %v191
    %v629 = vunpack.c.l.b16 %v192
    %v630 = vunpack.c.h.b16 %v192
    %v631 = vunpack.c.l.b16 %v193
    %v632 = vunpack.c.h.b16 %v193
    %v633 = vunpack.c.l.b16 %v194
    %v634 = vunpack.c.h.b16 %v194
    %v635 = vunpack.c.l.b16 %v195
    %v636 = vunpack.c.h.b16 %v195
    %v637 = vunpack.c.l.b16 %v196
    %v638 = vunpack.c.h.b16 %v196
    %v639 = vunpack.c.l.b16 %v197
    %v640 = vunpack.c.h.b16 %v197
    %v641 = vunpack.c.l.b16 %v198
    %v642 = vunpack.c.h.b16 %v198
    %v643 = vunpack.c.l.b16 %v199
    %v644 = vunpack.c.h.b16 %v199
    %v645 = vunpack.c.l.b16 %v200
    %v646 = vunpack.c.h.b16 %v200
    %v647 = vunpack.c.l.b16 %v201
    %v648 = vunpack.c.h.b16 %v201
    %v649 = vunpack.c.l.b16 %v202
    %v650 = vunpack.c.h.b16 %v202
    %v651 = vunpack.c.l.b16 %v203
    %v652 = vunpack.c.h.b16 %v203
    %v653 = vunpack.c.l.b16 %v204
    %v654 = vunpack.c.h.b16 %v204
    %v655 = vunpack.c.l.b16 %v205
    %v656 = vunpack.c.h.b16 %v205
    %v657 = vunpack.c.l.b16 %v206
    %v658 = vunpack.c.h.b16 %v206
    %v659 = vunpack.c.l.b16 %v207
    %v660 = vunpack.c.h.b16 %v207
    %v661 = vunpack.c.l.b16 %v208
    %v662 = vunpack.c.h.b16 %v208
    %v663 = vunpack.c.l.b16 %v209
    %v664 = vunpack.c.h.b16 %v209
    %v665 = vunpack.c.l.b16 %v210
    %v666 = vunpack.c.h.b16 %v210
    %v667 = vunpack.c.l.b16 %v211
    %v668 = vunpack.c.h.b16 %v211
    %v669 = vunpack.c.l.b16 %v212
    %v670 = vunpack.c.h.b16 %v212
    %v671 = vunpack.c.l.b16 %v213
    %v672 = vunpack.c.h.b16 %v213
    %v673 = vunpack.c.l.b16 %v214
    %v674 = vunpack.c.h.b16 %v214
    %v675 = vunpack.c.l.b16 %v215
    %v676 = vunpack.c.h.b16 %v215
    %v677 = vunpack.c.l.b16 %v216
    %v678 = vunpack.c.h.b16 %v216
    %v679 = vunpack.c.l.b16 %v217
    %v680 = vunpack.c.h.b16 %v217
    %v681 = vunpack.c.l.b16 %v218
    %v682 = vunpack.c.h.b16 %v218
    %v683 = vunpack.c.l.b16 %v219
    %v684 = vunpack.c.h.b16 %v219
    %v685 = vunpack.c.l.b16 %v220
    %v686 = vunpack.c.h.b16 %v220
    %v687 = vunpack.c.l.b16 %v221
    %v688 = vunpack.c.h.b16 %v221
    %v689 = vpack.c.b16 %v407, %v401
    %v690 = vpack.c.b16 %v408, %v402
    %v691 = vpack.c.b16 %v409, %v403
    %v692 = vpack.c.b16 %v410, %v404
    %v693 = vpack.c.b16 %v411, %v405
    %v694 = vpack.c.b16 %v412, %v406
    %v695 = vpack.c.b16 %v419, %v413
    %v696 = vpack.c.b16 %v420, %v414
    %v697 = vpack.c.b16 %v421, %v415
    %v698 = vpack.c.b16 %v422, %v416
    %v699 = vpack.c.b16 %v423, %v417
    %v700 = vpack.c.b16 %v424, %v418
    %v701 = vpack.c.b16 %v431, %v425
    %v702 = vpack.c.b16 %v432, %v426
    %v703 = vpack.c.b16 %v433, %v427
    %v704 = vpack.c.b16 %v434, %v428
    %v705 = vpack.c.b16 %v435, %v429
    %v706 = vpack.c.b16 %v436, %v430
    %v707 = vpack.c.b16 %v443, %v437
    %v708 = vpack.c.b16 %v444, %v438
    %v709 = vpack.c.b16 %v445, %v439
    %v710 = vpack.c.b16 %v446, %v440
    %v711 = vpack.c.b16 %v447, %v441
    %v712 = vpack.c.b16 %v448, %v442
    %v713 = vpack.c.b16 %v455, %v449
    %v714 = vpack.c.b16 %v456, %v450
    %v715 = vpack.c.b16 %v457, %v451
    %v716 = vpack.c.b16 %v458, %v452
    %v717 = vpack.c.b16 %v459, %v453
    %v718 = vpack.c.b16 %v460, %v454
    %v719 = vpack.c.b16 %v467, %v461
    %v720 = vpack.c.b16 %v468, %v462
    %v721 = vpack.c.b16 %v469, %v463
    %v722 = vpack.c.b16 %v470, %v464
    %v723 = vpack.c.b16 %v471, %v465
    %v724 = vpack.c.b16 %v472, %v466
    %v725 = vpack.c.b16 %v479, %v473
    %v726 = vpack.c.b16 %v480, %v474
    %v727 = vpack.c.b16 %v481, %v475
    %v728 = vpack.c.b16 %v482, %v476
    %v729 = vpack.c.b16 %v483, %v477
    %v730 = vpack.c.b16 %v484, %v478
    %v731 = vpack.c.b16 %v491, %v485
    %v732 = vpack.c.b16 %v492, %v486
    %v733 = vpack.c.b16 %v493, %v487
    %v734 = vpack.c.b16 %v494, %v488
    %v735 = vpack.c.b16 %v495, %v489
    %v736 = vpack.c.b16 %v496, %v490
    %v737 = vpack.c.b16 %v503, %v497
    %v738 = vpack.c.b16 %v504, %v498
    %v739 = vpack.c.b16 %v505, %v499
    %v740 = vpack.c.b16 %v506, %v500
    %v741 = vpack.c.b16 %v507, %v501
    %v742 = vpack.c.b16 %v508, %v502
    %v743 = vpack.c.b16 %v515, %v509
    %v744 = vpack.c.b16 %v516, %v510
    %v745 = vpack.c.b16 %v517, %v511
    %v746 = vpack.c.b16 %v518, %v512
    %v747 = vpack.c.b16 %v519, %v513
    %v748 = vpack.c.b16 %v520, %v514
    %v749 = vpack.c.b16 %v527, %v521
    %v750 = vpack.c.b16 %v528, %v522
    %v751 = vpack.c.b16 %v529, %v523
    %v752 = vpack.c.b16 %v530, %v524
    %v753 = vpack.c.b16 %v531, %v525
    %v754 = vpack.c.b16 %v532, %v526
    %v755 = vpack.c.b16 %v539, %v533
    %v756 = vpack.c.b16 %v540, %v534
    %v757 = vpack.c.b16 %v541, %v535
    %v758 = vpack.c.b16 %v542, %v536
    %v759 = vpack.c.b16 %v543, %v537
    %v760 = vpack.c.b16 %v544, %v538
    %v761 = vpack.c.b16 %v551, %v545
    %v762 = vpack.c.b16 %v552, %v546
    %v763 = vpack.c.b16 %v553, %v547
    %v764 = vpack.c.b16 %v554, %v548
    %v765 = vpack.c.b16 %v555, %v549
    %v766 = vpack.c.b16 %v556, %v550
    %v767 = vpack.c.b16 %v563, %v557
    %v768 = vpack.c.b16 %v564, %v558
    %v769 = vpack.c.b16 %v565, %v559
    %v770 = vpack.c.b16 %v566, %v560
    %v771 = vpack.c.b16 %v567, %v561
    %v772 = vpack.c.b16 %v568, %v562
    %v773 = vpack.c.b16 %v575, %v569
    %v774 = vpack.c.b16 %v576, %v570
    %v775 = vpack.c.b16 %v577, %v571
    %v776 = vpack.c.b16 %v578, %v572
    %v777 = vpack.c.b16 %v579, %v573
    %v778 = vpack.c.b16 %v580, %v574
    %v779 = vpack.c.b16 %v587, %v581
    %v780 = vpack.c.b16 %v588, %v582
    %v781 = vpack.c.b16 %v589, %v583
    %v782 = vpack.c.b16 %v590, %v584
    %v783 = vpack.c.b16 %v591, %v585
    %v784 = vpack.c.b16 %v592, %v586
    %v785 = vpack.c.b16 %v599, %v593
    %v786 = vpack.c.b16 %v600, %v594
    %v787 = vpack.c.b16 %v601, %v595
    %v788 = vpack.c.b16 %v602, %v596
    %v789 = vpack.c.b16 %v603, %v597
    %v790 = vpack.c.b16 %v604, %v598
    %v791 = vpack.c.b16 %v611, %v605
    %v792 = vpack.c.b16 %v612, %v606
    %v793 = vpack.c.b16 %v613, %v607
    %v794 = vpack.c.b16 %v614, %v608
    %v795 = vpack.c.b16 %v615, %v609
    %v796 = vpack.c.b16 %v616, %v610
    %v797 = vpack.c.b16 %v623, %v617
    %v798 = vpack.c.b16 %v624, %v618
    %v799 = vpack.c.b16 %v625, %v619
    %v800 = vpack.c.b16 %v626, %v620
    %v801 = vpack.c.b16 %v627, %v621
    %v802 = vpack.c.b16 %v628, %v622
    %v803 = vpack.c.b16 %v635, %v629
    %v804 = vpack.c.b16 %v636, %v630
    %v805 = vpack.c.b16 %v637, %v631
    %v806 = vpack.c.b16 %v638, %v632
    %v807 = vpack.c.b16 %v639, %v633
    %v808 = vpack.c.b16 %v640, %v634
    %v809 = vpack.c.b16 %v647, %v641
    %v810 = vpack.c.b16 %v648, %v642
    %v811 = vpack.c.b16 %v649, %v643
    %v812 = vpack.c.b16 %v650, %v644
    %v813 = vpack.c.b16 %v651, %v645
    %v814 = vpack.c.b16 %v652, %v646
    %v815 = vpack.c.b16 %v659, %v653
    %v816 = vpack.c.b16 %v660, %v654
    %v817 = vpack.c.b16 %v661, %v655
    %v818 = vpack.c.b16 %v662, %v656
    %v819 = vpack.c.b16 %v663, %v657
    %v820 = vpack.c.b16 %v664, %v658
    %v821 = vpack.c.b16 %v671, %v665
    %v822 = vpack.c.b16 %v672, %v666
    %v823 = vpack.c.b16 %v673, %v667
    %v824 = vpack.c.b16 %v674, %v668
    %v825 = vpack.c.b16 %v675, %v669
    %v826 = vpack.c.b16 %v676, %v670
    %v827 = vpack.c.b16 %v683, %v677
    %v828 = vpack.c.b16 %v684, %v678
    %v829 = vpack.c.b16 %v685, %v679
    %v830 = vpack.c.b16 %v686, %v680
    %v831 = vpack.c.b16 %v687, %v681
    %v832 = vpack.c.b16 %v688, %v682
    %977 = vmatprep.subr.bf16.mxu0 %v690
    %978 = vmatpush1.bf16.msra.mxu0 %v689
    %979 = vmatprep.subr.bf16.mxu0 %v696
    %980 = vmatpush1.bf16.msra.mxu0 %v695
    %981 = vmatprep.subr.bf16.mxu0 %v702
    %982 = vmatpush1.bf16.msra.mxu0 %v701
    %983 = vmatprep.subr.bf16.mxu0 %v708
    %984 = vmatpush1.bf16.msra.mxu0 %v707
    %985 = vmatprep.subr.bf16.mxu0 %v714
    %986 = vmatpush1.bf16.msra.mxu0 %v713
    %987 = vmatprep.subr.bf16.mxu0 %v720
    %988 = vmatpush1.bf16.msra.mxu0 %v719
    %989 = vmatprep.subr.bf16.mxu0 %v726
    %990 = vmatpush1.bf16.msra.mxu0 %v725
    %991 = vmatprep.subr.bf16.mxu0 %v732
    %992 = vmatpush1.bf16.msra.mxu0 %v731
    %993 = vmatprep.subr.bf16.mxu0 %v738
    %994 = vmatpush1.bf16.msra.mxu0 %v737
    %995 = vmatprep.subr.bf16.mxu0 %v744
    %996 = vmatpush1.bf16.msra.mxu0 %v743
    %997 = vmatprep.subr.bf16.mxu0 %v750
    %998 = vmatpush1.bf16.msra.mxu0 %v749
    %999 = vmatprep.subr.bf16.mxu0 %v756
    %1000 = vmatpush1.bf16.msra.mxu0 %v755
    %1001 = vmatprep.subr.bf16.mxu0 %v762
    %1002 = vmatpush1.bf16.msra.mxu0 %v761
    %1003 = vmatprep.subr.bf16.mxu0 %v768
    %1004 = vmatpush1.bf16.msra.mxu0 %v767
    %1005 = vmatprep.subr.bf16.mxu0 %v774
    %1006 = vmatpush1.bf16.msra.mxu0 %v773
    %1007 = vmatprep.subr.bf16.mxu0 %v780
    %1008 = vmatpush1.bf16.msra.mxu0 %v779
    %1009 = vmatprep.mubr.bf16.mxu0 %v252
    %1010 = vmatmul.mubr.bf16.gmra.mrb[0].mxu0 %v251
    %v1011 = vpop.f32.mrb[0].mxu0
    %v1012 = vadd.f32 %v225, %v1011
    %v1013 = vpop.f32.mrb[0].mxu0
    %v1014 = vadd.f32 %v229, %v1013
    %v1015 = vpop.f32.mrb[0].mxu0
    %v1016 = vpop.f32.mrb[0].mxu0
    %1017 = vdwg.mxu0
    %1018 = vmatprep.subr.bf16.mxu0 %v786
    %1019 = vmatpush1.bf16.msra.mxu0 %v785
    %1020 = vmatprep.subr.bf16.mxu0 %v792
    %1021 = vmatpush1.bf16.msra.mxu0 %v791
    %1022 = vmatprep.subr.bf16.mxu0 %v798
    %1023 = vmatpush1.bf16.msra.mxu0 %v797
    %1024 = vmatprep.subr.bf16.mxu0 %v804
    %1025 = vmatpush1.bf16.msra.mxu0 %v803
    %1026 = vmatprep.subr.bf16.mxu0 %v810
    %1027 = vmatpush1.bf16.msra.mxu0 %v809
    %1028 = vmatprep.subr.bf16.mxu0 %v816
    %1029 = vmatpush1.bf16.msra.mxu0 %v815
    %1030 = vmatprep.subr.bf16.mxu0 %v822
    %1031 = vmatpush1.bf16.msra.mxu0 %v821
    %1032 = vmatprep.subr.bf16.mxu0 %v828
    %1033 = vmatpush1.bf16.msra.mxu0 %v827
    %1034 = vmatprep.subr.bf16.mxu0 0
    %1035 = vmatpush1.bf16.msra.mxu0 0
    %1036 = vmatprep.subr.bf16.mxu0 0
    %1037 = vmatpush1.bf16.msra.mxu0 0
    %1038 = vmatprep.subr.bf16.mxu0 0
    %1039 = vmatpush1.bf16.msra.mxu0 0
    %1040 = vmatprep.subr.bf16.mxu0 0
    %1041 = vmatpush1.bf16.msra.mxu0 0
    %1042 = vmatprep.subr.bf16.mxu0 0
    %1043 = vmatpush1.bf16.msra.mxu0 0
    %1044 = vmatprep.subr.bf16.mxu0 0
    %1045 = vmatpush1.bf16.msra.mxu0 0
    %1046 = vmatprep.subr.bf16.mxu0 0
    %1047 = vmatpush1.bf16.msra.mxu0 0
    %1048 = vmatprep.subr.bf16.mxu0 0
    %1049 = vmatpush1.bf16.msra.mxu0 0
    %1050 = vmatprep.mubr.bf16.mxu0 0
    %1051 = vmatmul.mubr.bf16.gmra.mrb[0].mxu0 %v253
    %v1052 = vpop.f32.mrb[0].mxu0
    %v1053 = vadd.f32 %v1012, %v1052
    %v1054 = vpop.f32.mrb[0].mxu0
    %v1055 = vadd.f32 %v1014, %v1054
    %v1056 = vpop.f32.mrb[0].mxu0
    %v1057 = vpop.f32.mrb[0].mxu0
    %1058 = vdwg.mxu0
    %1059 = vmatprep.subr.bf16.mxu0 %v692
    %1060 = vmatpush1.bf16.msra.mxu0 %v691
    %1061 = vmatprep.subr.bf16.mxu0 %v698
    %1062 = vmatpush1.bf16.msra.mxu0 %v697
    %1063 = vmatprep.subr.bf16.mxu0 %v704
    %1064 = vmatpush1.bf16.msra.mxu0 %v703
    %1065 = vmatprep.subr.bf16.mxu0 %v710
    %1066 = vmatpush1.bf16.msra.mxu0 %v709
    %1067 = vmatprep.subr.bf16.mxu0 %v716
    %1068 = vmatpush1.bf16.msra.mxu0 %v715
    %1069 = vmatprep.subr.bf16.mxu0 %v722
    %1070 = vmatpush1.bf16.msra.mxu0 %v721
    %1071 = vmatprep.subr.bf16.mxu0 %v728
    %1072 = vmatpush1.bf16.msra.mxu0 %v727
    %1073 = vmatprep.subr.bf16.mxu0 %v734
    %1074 = vmatpush1.bf16.msra.mxu0 %v733
    %1075 = vmatprep.subr.bf16.mxu0 %v740
    %1076 = vmatpush1.bf16.msra.mxu0 %v739
    %1077 = vmatprep.subr.bf16.mxu0 %v746
    %1078 = vmatpush1.bf16.msra.mxu0 %v745
    %1079 = vmatprep.subr.bf16.mxu0 %v752
    %1080 = vmatpush1.bf16.msra.mxu0 %v751
    %1081 = vmatprep.subr.bf16.mxu0 %v758
    %1082 = vmatpush1.bf16.msra.mxu0 %v757
    %1083 = vmatprep.subr.bf16.mxu0 %v764
    %1084 = vmatpush1.bf16.msra.mxu0 %v763
    %1085 = vmatprep.subr.bf16.mxu0 %v770
    %1086 = vmatpush1.bf16.msra.mxu0 %v769
    %1087 = vmatprep.subr.bf16.mxu0 %v776
    %1088 = vmatpush1.bf16.msra.mxu0 %v775
    %1089 = vmatprep.subr.bf16.mxu0 %v782
    %1090 = vmatpush1.bf16.msra.mxu0 %v781
    %1091 = vmatprep.mubr.bf16.mxu0 %v252
    %1092 = vmatmul.mubr.bf16.gmra.mrb[0].mxu0 %v251
    %v1093 = vpop.f32.mrb[0].mxu0
    %v1094 = vadd.f32 %v233, %v1093
    %v1095 = vpop.f32.mrb[0].mxu0
    %v1096 = vadd.f32 %v237, %v1095
    %v1097 = vpop.f32.mrb[0].mxu0
    %v1098 = vpop.f32.mrb[0].mxu0
    %1099 = vdwg.mxu0
    %1100 = vmatprep.subr.bf16.mxu0 %v788
    %1101 = vmatpush1.bf16.msra.mxu0 %v787
    %1102 = vmatprep.subr.bf16.mxu0 %v794
    %1103 = vmatpush1.bf16.msra.mxu0 %v793
    %1104 = vmatprep.subr.bf16.mxu0 %v800
    %1105 = vmatpush1.bf16.msra.mxu0 %v799
    %1106 = vmatprep.subr.bf16.mxu0 %v806
    %1107 = vmatpush1.bf16.msra.mxu0 %v805
    %1108 = vmatprep.subr.bf16.mxu0 %v812
    %1109 = vmatpush1.bf16.msra.mxu0 %v811
    %1110 = vmatprep.subr.bf16.mxu0 %v818
    %1111 = vmatpush1.bf16.msra.mxu0 %v817
    %1112 = vmatprep.subr.bf16.mxu0 %v824
    %1113 = vmatpush1.bf16.msra.mxu0 %v823
    %1114 = vmatprep.subr.bf16.mxu0 %v830
    %1115 = vmatpush1.bf16.msra.mxu0 %v829
    %1116 = vmatprep.subr.bf16.mxu0 0
    %1117 = vmatpush1.bf16.msra.mxu0 0
    %1118 = vmatprep.subr.bf16.mxu0 0
    %1119 = vmatpush1.bf16.msra.mxu0 0
    %1120 = vmatprep.subr.bf16.mxu0 0
    %1121 = vmatpush1.bf16.msra.mxu0 0
    %1122 = vmatprep.subr.bf16.mxu0 0
    %1123 = vmatpush1.bf16.msra.mxu0 0
    %1124 = vmatprep.subr.bf16.mxu0 0
    %1125 = vmatpush1.bf16.msra.mxu0 0
    %1126 = vmatprep.subr.bf16.mxu0 0
    %1127 = vmatpush1.bf16.msra.mxu0 0
    %1128 = vmatprep.subr.bf16.mxu0 0
    %1129 = vmatpush1.bf16.msra.mxu0 0
    %1130 = vmatprep.subr.bf16.mxu0 0
    %1131 = vmatpush1.bf16.msra.mxu0 0
    %1132 = vmatprep.mubr.bf16.mxu0 0
    %1133 = vmatmul.mubr.bf16.gmra.mrb[0].mxu0 %v253
    %v1134 = vpop.f32.mrb[0].mxu0
    %v1135 = vadd.f32 %v1094, %v1134
    %v1136 = vpop.f32.mrb[0].mxu0
    %v1137 = vadd.f32 %v1096, %v1136
    %v1138 = vpop.f32.mrb[0].mxu0
    %v1139 = vpop.f32.mrb[0].mxu0
    %1140 = vdwg.mxu0
    %1141 = vmatprep.subr.bf16.mxu0 %v694
    %1142 = vmatpush1.bf16.msra.mxu0 %v693
    %1143 = vmatprep.subr.bf16.mxu0 %v700
    %1144 = vmatpush1.bf16.msra.mxu0 %v699
    %1145 = vmatprep.subr.bf16.mxu0 %v706
    %1146 = vmatpush1.bf16.msra.mxu0 %v705
    %1147 = vmatprep.subr.bf16.mxu0 %v712
    %1148 = vmatpush1.bf16.msra.mxu0 %v711
    %1149 = vmatprep.subr.bf16.mxu0 %v718
    %1150 = vmatpush1.bf16.msra.mxu0 %v717
    %1151 = vmatprep.subr.bf16.mxu0 %v724
    %1152 = vmatpush1.bf16.msra.mxu0 %v723
    %1153 = vmatprep.subr.bf16.mxu0 %v730
    %1154 = vmatpush1.bf16.msra.mxu0 %v729
    %1155 = vmatprep.subr.bf16.mxu0 %v736
    %1156 = vmatpush1.bf16.msra.mxu0 %v735
    %1157 = vmatprep.subr.bf16.mxu0 %v742
    %1158 = vmatpush1.bf16.msra.mxu0 %v741
    %1159 = vmatprep.subr.bf16.mxu0 %v748
    %1160 = vmatpush1.bf16.msra.mxu0 %v747
    %1161 = vmatprep.subr.bf16.mxu0 %v754
    %1162 = vmatpush1.bf16.msra.mxu0 %v753
    %1163 = vmatprep.subr.bf16.mxu0 %v760
    %1164 = vmatpush1.bf16.msra.mxu0 %v759
    %1165 = vmatprep.subr.bf16.mxu0 %v766
    %1166 = vmatpush1.bf16.msra.mxu0 %v765
    %1167 = vmatprep.subr.bf16.mxu0 %v772
    %1168 = vmatpush1.bf16.msra.mxu0 %v771
    %1169 = vmatprep.subr.bf16.mxu0 %v778
    %1170 = vmatpush1.bf16.msra.mxu0 %v777
    %1171 = vmatprep.subr.bf16.mxu0 %v784
    %1172 = vmatpush1.bf16.msra.mxu0 %v783
    %1173 = vmatprep.mubr.bf16.mxu0 %v252
    %1174 = vmatmul.mubr.bf16.gmra.mrb[0].mxu0 %v251
    %v1175 = vpop.f32.mrb[0].mxu0
    %v1176 = vadd.f32 %v241, %v1175
    %v1177 = vpop.f32.mrb[0].mxu0
    %v1178 = vadd.f32 %v245, %v1177
    %v1179 = vpop.f32.mrb[0].mxu0
    %v1180 = vpop.f32.mrb[0].mxu0
    %1181 = vdwg.mxu0
    %1182 = vmatprep.subr.bf16.mxu0 %v790
    %1183 = vmatpush1.bf16.msra.mxu0 %v789
    %1184 = vmatprep.subr.bf16.mxu0 %v796
    %1185 = vmatpush1.bf16.msra.mxu0 %v795
    %1186 = vmatprep.subr.bf16.mxu0 %v802
    %1187 = vmatpush1.bf16.msra.mxu0 %v801
    %1188 = vmatprep.subr.bf16.mxu0 %v808
    %1189 = vmatpush1.bf16.msra.mxu0 %v807
    %1190 = vmatprep.subr.bf16.mxu0 %v814
    %1191 = vmatpush1.bf16.msra.mxu0 %v813
    %1192 = vmatprep.subr.bf16.mxu0 %v820
    %1193 = vmatpush1.bf16.msra.mxu0 %v819
    %1194 = vmatprep.subr.bf16.mxu0 %v826
    %1195 = vmatpush1.bf16.msra.mxu0 %v825
    %1196 = vmatprep.subr.bf16.mxu0 %v832
    %1197 = vmatpush1.bf16.msra.mxu0 %v831
    %1198 = vmatprep.subr.bf16.mxu0 0
    %1199 = vmatpush1.bf16.msra.mxu0 0
    %1200 = vmatprep.subr.bf16.mxu0 0
    %1201 = vmatpush1.bf16.msra.mxu0 0
    %1202 = vmatprep.subr.bf16.mxu0 0
    %1203 = vmatpush1.bf16.msra.mxu0 0
    %1204 = vmatprep.subr.bf16.mxu0 0
    %1205 = vmatpush1.bf16.msra.mxu0 0
    %1206 = vmatprep.subr.bf16.mxu0 0
    %1207 = vmatpush1.bf16.msra.mxu0 0
    %1208 = vmatprep.subr.bf16.mxu0 0
    %1209 = vmatpush1.bf16.msra.mxu0 0
    %1210 = vmatprep.subr.bf16.mxu0 0
    %1211 = vmatpush1.bf16.msra.mxu0 0
    %1212 = vmatprep.subr.bf16.mxu0 0
    %1213 = vmatpush1.bf16.msra.mxu0 0
    %1214 = vmatprep.mubr.bf16.mxu0 0
    %1215 = vmatmul.mubr.bf16.gmra.mrb[0].mxu0 %v253
    %v1216 = vpop.f32.mrb[0].mxu0
    %v1217 = vadd.f32 %v1176, %v1216
    %v1218 = vpop.f32.mrb[0].mxu0
    %v1219 = vadd.f32 %v1178, %v1218
    %v1220 = vpop.f32.mrb[0].mxu0
    %v1221 = vpop.f32.mrb[0].mxu0
    %1222 = vdwg.mxu0
    %v1223 = vld [vmem:[#allocation8] sm:$0xff]
    %v1224 = vld [vmem:[#allocation8 + $0x8] sm:$0xff]
    %v1225 = vld [vmem:[#allocation8 + $0x10] sm:$0xff]
    %v1226 = vld [vmem:[#allocation8 + $0x18] sm:$0xff]
    %v1227 = vld [vmem:[#allocation8 + $0x20] sm:$0xff]
    %v1228 = vld [vmem:[#allocation8 + $0x28] sm:$0xff]
    %v1229 = vld [vmem:[#allocation8 + $0x30] sm:$0xff]
    %v1230 = vld [vmem:[#allocation8 + $0x38] sm:$0xff]
    %v1231 = vld [vmem:[#allocation8 + $0x40] sm:$0xff]
    %v1232 = vld [vmem:[#allocation8 + $0x48] sm:$0xff]
    %v1233 = vld [vmem:[#allocation8 + $0x50] sm:$0xff]
    %v1234 = vld [vmem:[#allocation8 + $0x58] sm:$0xff]
    %v1235 = vld [vmem:[#allocation8 + $0x60] sm:$0xff]
    %v1236 = vld [vmem:[#allocation8 + $0x68] sm:$0xff]
    %v1237 = vld [vmem:[#allocation8 + $0x70] sm:$0xff]
    %v1238 = vld [vmem:[#allocation8 + $0x78] sm:$0xff]
    %v1239 = vld [vmem:[#allocation8 + $0x80] sm:$0xff]
    %v1240 = vld [vmem:[#allocation8 + $0x88] sm:$0xff]
    %v1241 = vld [vmem:[#allocation8 + $0x90] sm:$0xff]
    %v1242 = vld [vmem:[#allocation8 + $0x98] sm:$0xff]
    %v1243 = vld [vmem:[#allocation8 + $0xa0] sm:$0xff]
    %v1244 = vld [vmem:[#allocation8 + $0xa8] sm:$0xff]
    %v1245 = vld [vmem:[#allocation8 + $0xb0] sm:$0xff]
    %v1246 = vld [vmem:[#allocation8 + $0xb8] sm:$0xff]
    %v1247 = vld [vmem:[#allocation8 + $0xc0] sm:$0xff]
    %v1248 = vld [vmem:[#allocation8 + $0xc8] sm:$0xff]
    %v1249 = vld [vmem:[#allocation8 + $0xd0] sm:$0xff]
    %v1250 = vld [vmem:[#allocation8 + $0xd8] sm:$0xff]
    %v1251 = vld [vmem:[#allocation8 + $0xe0] sm:$0xff]
    %v1252 = vld [vmem:[#allocation8 + $0xe8] sm:$0xff]
    %v1253 = vld [vmem:[#allocation8 + $0xf0] sm:$0xff]
    %v1254 = vld [vmem:[#allocation8 + $0xf8] sm:$0xff]
    %v1255 = vld [vmem:[#allocation8 + $0x100] sm:$0xff]
    %v1256 = vld [vmem:[#allocation8 + $0x108] sm:$0xff]
    %v1257 = vld [vmem:[#allocation8 + $0x110] sm:$0xff]
    %v1258 = vld [vmem:[#allocation8 + $0x118] sm:$0xff]
    %v1259 = vld [vmem:[#allocation8 + $0x120] sm:$0xff]
    %v1260 = vld [vmem:[#allocation8 + $0x128] sm:$0xff]
    %v1261 = vld [vmem:[#allocation8 + $0x130] sm:$0xff]
    %v1262 = vld [vmem:[#allocation8 + $0x138] sm:$0xff]
    %v1263 = vld [vmem:[#allocation8 + $0x140] sm:$0xff]
    %v1264 = vld [vmem:[#allocation8 + $0x148] sm:$0xff]
    %v1265 = vld [vmem:[#allocation8 + $0x150] sm:$0xff]
    %v1266 = vld [vmem:[#allocation8 + $0x158] sm:$0xff]
    %v1267 = vld [vmem:[#allocation8 + $0x160] sm:$0xff]
    %v1268 = vld [vmem:[#allocation8 + $0x168] sm:$0xff]
    %v1269 = vld [vmem:[#allocation8 + $0x170] sm:$0xff]
    %v1270 = vld [vmem:[#allocation8 + $0x178] sm:$0xff]
    %v1271 = vld [vmem:[#allocation8 + $0x180] sm:$0xff]
    %v1272 = vld [vmem:[#allocation8 + $0x188] sm:$0xff]
    %v1273 = vld [vmem:[#allocation8 + $0x190] sm:$0xff]
    %v1274 = vld [vmem:[#allocation8 + $0x198] sm:$0xff]
    %v1275 = vld [vmem:[#allocation8 + $0x1a0] sm:$0xff]
    %v1276 = vld [vmem:[#allocation8 + $0x1a8] sm:$0xff]
    %v1277 = vld [vmem:[#allocation8 + $0x1b0] sm:$0xff]
    %v1278 = vld [vmem:[#allocation8 + $0x1b8] sm:$0xff]
    %v1279 = vld [vmem:[#allocation8 + $0x1c0] sm:$0xff]
    %v1280 = vld [vmem:[#allocation8 + $0x1c8] sm:$0xff]
    %v1281 = vld [vmem:[#allocation8 + $0x1d0] sm:$0xff]
    %v1282 = vld [vmem:[#allocation8 + $0x1d8] sm:$0xff]
    %v1283 = vld [vmem:[#allocation8 + $0x1e0] sm:$0xff]
    %v1284 = vld [vmem:[#allocation8 + $0x1e8] sm:$0xff]
    %v1285 = vld [vmem:[#allocation8 + $0x1f0] sm:$0xff]
    %v1286 = vld [vmem:[#allocation8 + $0x1f8] sm:$0xff]
    %v1287 = vld [vmem:[#allocation8 + $0x200] sm:$0xff]
    %v1288 = vld [vmem:[#allocation8 + $0x208] sm:$0xff]
    %v1289 = vld [vmem:[#allocation8 + $0x210] sm:$0xff]
    %v1290 = vld [vmem:[#allocation8 + $0x218] sm:$0xff]
    %v1291 = vld [vmem:[#allocation8 + $0x220] sm:$0xff]
    %v1292 = vld [vmem:[#allocation8 + $0x228] sm:$0xff]
    %v1293 = vld [vmem:[#allocation8 + $0x230] sm:$0xff]
    %v1294 = vld [vmem:[#allocation8 + $0x238] sm:$0xff]
    %v1295 = vld [vmem:[#allocation8 + $0x240] sm:$0xff]
    %v1296 = vld [vmem:[#allocation8 + $0x248] sm:$0xff]
    %v1297 = vld [vmem:[#allocation8 + $0x250] sm:$0xff]
    %v1298 = vld [vmem:[#allocation8 + $0x258] sm:$0xff]
    %v1299 = vld [vmem:[#allocation8 + $0x260] sm:$0xff]
    %v1300 = vld [vmem:[#allocation8 + $0x268] sm:$0xff]
    %v1301 = vld [vmem:[#allocation8 + $0x270] sm:$0xff]
    %v1302 = vld [vmem:[#allocation8 + $0x278] sm:$0xff]
    %v1303 = vld [vmem:[#allocation8 + $0x280] sm:$0xff]
    %v1304 = vld [vmem:[#allocation8 + $0x288] sm:$0xff]
    %v1305 = vld [vmem:[#allocation8 + $0x290] sm:$0xff]
    %v1306 = vld [vmem:[#allocation8 + $0x298] sm:$0xff]
    %v1307 = vld [vmem:[#allocation8 + $0x2a0] sm:$0xff]
    %v1308 = vld [vmem:[#allocation8 + $0x2a8] sm:$0xff]
    %v1309 = vld [vmem:[#allocation8 + $0x2b0] sm:$0xff]
    %v1310 = vld [vmem:[#allocation8 + $0x2b8] sm:$0xff]
    %v1311 = vld [vmem:[#allocation8 + $0x2c0] sm:$0xff]
    %v1312 = vld [vmem:[#allocation8 + $0x2c8] sm:$0xff]
    %v1313 = vld [vmem:[#allocation8 + $0x2d0] sm:$0xff]
    %v1314 = vld [vmem:[#allocation8 + $0x2d8] sm:$0xff]
    %v1315 = vld [vmem:[#allocation8 + $0x2e0] sm:$0xff]
    %v1316 = vld [vmem:[#allocation8 + $0x2e8] sm:$0xff]
    %v1317 = vld [vmem:[#allocation8 + $0x2f0] sm:$0xff]
    %v1318 = vld [vmem:[#allocation8 + $0x2f8] sm:$0xff]
    %v1319 = vmul.f32 %v1053, 0.5
    %v1320 = vmul.f32 %v1055, 0.5
    %v1321 = vmul.f32 %v1135, 0.5
    %v1322 = vmul.f32 %v1137, 0.5
    %v1323 = vmul.f32 %v1217, 0.5
    %v1324 = vmul.f32 %v1219, 0.5
    %v1325 = vmul.f32 %v1053, 0.70710677
    %v1326 = vmul.f32 %v1055, 0.70710677
    %v1327 = vmul.f32 %v1135, 0.70710677
    %v1328 = vmul.f32 %v1137, 0.70710677
    %v1329 = vmul.f32 %v1217, 0.70710677
    %v1330 = vmul.f32 %v1219, 0.70710677
    %v1331 = verf.f32.pop %v1325
    %v1332 = verf.f32.pop %v1326
    %v1333 = verf.f32.pop %v1327
    %v1334 = verf.f32.pop %v1328
    %v1335 = verf.f32.pop %v1329
    %v1336 = verf.f32.pop %v1330
    %v1337 = vadd.f32 %v1331, 1.0
    %v1338 = vadd.f32 %v1332, 1.0
    %v1339 = vadd.f32 %v1333, 1.0
    %v1340 = vadd.f32 %v1334, 1.0
    %v1341 = vadd.f32 %v1335, 1.0
    %v1342 = vadd.f32 %v1336, 1.0
    %v1343 = vmul.f32 %v1319, %v1337
    %v1344 = vmul.f32 %v1320, %v1338
    %v1345 = vmul.f32 %v1321, %v1339
    %v1346 = vmul.f32 %v1322, %v1340
    %v1347 = vmul.f32 %v1323, %v1341
    %v1348 = vmul.f32 %v1324, %v1342
    %v1349 = vadd.f32 %v1343, %v1344
    %v1350 = vadd.f32 %v1349, %v1345
    %v1351 = vadd.f32 %v1350, %v1346
    %v1352 = vadd.f32 %v1351, %v1347
    %v1353 = vadd.f32 %v1352, %v1348
    %1354 = vadd.xlane.f32.xlu0 %v1353
    %v1355 = vpop.xlane.xlu0 %1354
    %v1356 = vrcp.pop 768.0
    %v1357 = vmul.f32 %v1355, %v1356
    %v1358 = vsub.f32 %v1343, %v1357
    %v1359 = vsub.f32 %v1344, %v1357
    %v1360 = vsub.f32 %v1345, %v1357
    %v1361 = vsub.f32 %v1346, %v1357
    %v1362 = vsub.f32 %v1347, %v1357
    %v1363 = vsub.f32 %v1348, %v1357
    %v1364 = vmul.f32 %v1358, %v1358
    %v1365 = vmul.f32 %v1359, %v1359
    %v1366 = vmul.f32 %v1360, %v1360
    %v1367 = vmul.f32 %v1361, %v1361
    %v1368 = vmul.f32 %v1362, %v1362
    %v1369 = vmul.f32 %v1363, %v1363
    %v1370 = vadd.f32 %v1364, %v1365
    %v1371 = vadd.f32 %v1370, %v1366
    %v1372 = vadd.f32 %v1371, %v1367
    %v1373 = vadd.f32 %v1372, %v1368
    %v1374 = vadd.f32 %v1373, %v1369
    %1375 = vadd.xlane.f32.xlu0 %v1374
    %v1376 = vpop.xlane.xlu0 %1375
    %v1377 = vmul.f32 %v1376, %v1356
    %v1378 = vadd.f32 %v1377, 1e-12
    %v1379 = vrsqrt.pop %v1378
    %v1380 = vmul.f32 %v1358, %v1379
    %v1381 = vmul.f32 %v1359, %v1379
    %v1382 = vmul.f32 %v1360, %v1379
    %v1383 = vmul.f32 %v1361, %v1379
    %v1384 = vmul.f32 %v1362, %v1379
    %v1385 = vmul.f32 %v1363, %v1379
    %v1386 = vlaneseq
    %v1387 = vshrl.u32 %v1386, 7
    %v1388 = vsub.s32 1, %v1387
    %v1389 = vrot.slane %v70, %v1388
    %v1390 = vlaneseq
    %v1391 = vshrl.u32 %v1390, 7
    %v1392 = vsub.s32 1, %v1391
    %v1393 = vrot.slane %v71, %v1392
    %v1394 = vlaneseq
    %v1395 = vshrl.u32 %v1394, 7
    %v1396 = vsub.s32 1, %v1395
    %v1397 = vrot.slane %v72, %v1396
    %v1398 = vlaneseq
    %v1399 = vshrl.u32 %v1398, 7
    %v1400 = vsub.s32 1, %v1399
    %v1401 = vrot.slane %v73, %v1400
    %v1402 = vlaneseq
    %v1403 = vshrl.u32 %v1402, 7
    %v1404 = vsub.s32 1, %v1403
    %v1405 = vrot.slane %v74, %v1404
    %v1406 = vlaneseq
    %v1407 = vshrl.u32 %v1406, 7
    %v1408 = vsub.s32 1, %v1407
    %v1409 = vrot.slane %v75, %v1408
    %v1410 = vmul.f32 %v1380, %v1389
    %v1411 = vmul.f32 %v1381, %v1393
    %v1412 = vmul.f32 %v1382, %v1397
    %v1413 = vmul.f32 %v1383, %v1401
    %v1414 = vmul.f32 %v1384, %v1405
    %v1415 = vmul.f32 %v1385, %v1409
    %v1416 = vlaneseq
    %v1417 = vshrl.u32 %v1416, 7
    %v1418 = vsub.s32 2, %v1417
    %v1419 = vrot.slane %v70, %v1418
    %v1420 = vlaneseq
    %v1421 = vshrl.u32 %v1420, 7
    %v1422 = vsub.s32 2, %v1421
    %v1423 = vrot.slane %v71, %v1422
    %v1424 = vlaneseq
    %v1425 = vshrl.u32 %v1424, 7
    %v1426 = vsub.s32 2, %v1425
    %v1427 = vrot.slane %v72, %v1426
    %v1428 = vlaneseq
    %v1429 = vshrl.u32 %v1428, 7
    %v1430 = vsub.s32 2, %v1429
    %v1431 = vrot.slane %v73, %v1430
    %v1432 = vlaneseq
    %v1433 = vshrl.u32 %v1432, 7
    %v1434 = vsub.s32 2, %v1433
    %v1435 = vrot.slane %v74, %v1434
    %v1436 = vlaneseq
    %v1437 = vshrl.u32 %v1436, 7
    %v1438 = vsub.s32 2, %v1437
    %v1439 = vrot.slane %v75, %v1438
    %v1440 = vadd.f32 %v1410, %v1419
    %v1441 = vadd.f32 %v1411, %v1423
    %v1442 = vadd.f32 %v1412, %v1427
    %v1443 = vadd.f32 %v1413, %v1431
    %v1444 = vadd.f32 %v1414, %v1435
    %v1445 = vadd.f32 %v1415, %v1439
    %v1446 = vlaneseq
    %v1447 = vshrl.u32 %v1446, 7
    %v1448 = vsub.s32 3, %v1447
    %v1449 = vrot.slane %v70, %v1448
    %1450 = vmatprep.subr.mxu0 0.0
    %1451 = vmatpush1.msra.mxu0 %v1223
    %1452 = vmatprep.subr.mxu0 0.0
    %1453 = vmatpush1.msra.mxu0 %v1224
    %1454 = vmatprep.subr.mxu0 0.0
    %1455 = vmatpush1.msra.mxu0 %v1225
    %1456 = vmatprep.subr.mxu0 0.0
    %1457 = vmatpush1.msra.mxu0 %v1226
    %1458 = vmatprep.subr.mxu0 0.0
    %1459 = vmatpush1.msra.mxu0 %v1227
    %1460 = vmatprep.subr.mxu0 0.0
    %1461 = vmatpush1.msra.mxu0 %v1228
    %1462 = vmatprep.subr.mxu0 0.0
    %1463 = vmatpush1.msra.mxu0 %v1229
    %1464 = vmatprep.subr.mxu0 0.0
    %1465 = vmatpush1.msra.mxu0 %v1230
    %1466 = vmatprep.subr.mxu0 0.0
    %1467 = vmatpush1.msra.mxu0 %v1231
    %1468 = vmatprep.subr.mxu0 0.0
    %1469 = vmatpush1.msra.mxu0 %v1232
    %1470 = vmatprep.subr.mxu0 0.0
    %1471 = vmatpush1.msra.mxu0 %v1233
    %1472 = vmatprep.subr.mxu0 0.0
    %1473 = vmatpush1.msra.mxu0 %v1234
    %1474 = vmatprep.subr.mxu0 0.0
    %1475 = vmatpush1.msra.mxu0 %v1235
    %1476 = vmatprep.subr.mxu0 0.0
    %1477 = vmatpush1.msra.mxu0 %v1236
    %1478 = vmatprep.subr.mxu0 0.0
    %1479 = vmatpush1.msra.mxu0 %v1237
    %1480 = vmatprep.subr.mxu0 0.0
    %1481 = vmatpush1.msra.mxu0 %v1238
    %1482 = vmatprep.subr.mxu0 0.0
    %1483 = vmatpush1.msra.mxu0 %v1239
    %1484 = vmatprep.subr.mxu0 0.0
    %1485 = vmatpush1.msra.mxu0 %v1240
    %1486 = vmatprep.subr.mxu0 0.0
    %1487 = vmatpush1.msra.mxu0 %v1241
    %1488 = vmatprep.subr.mxu0 0.0
    %1489 = vmatpush1.msra.mxu0 %v1242
    %1490 = vmatprep.subr.mxu0 0.0
    %1491 = vmatpush1.msra.mxu0 %v1243
    %1492 = vmatprep.subr.mxu0 0.0
    %1493 = vmatpush1.msra.mxu0 %v1244
    %1494 = vmatprep.subr.mxu0 0.0
    %1495 = vmatpush1.msra.mxu0 %v1245
    %1496 = vmatprep.subr.mxu0 0.0
    %1497 = vmatpush1.msra.mxu0 %v1246
    %1498 = vmatprep.subr.mxu0 0.0
    %1499 = vmatpush1.msra.mxu0 %v1247
    %1500 = vmatprep.subr.mxu0 0.0
    %1501 = vmatpush1.msra.mxu0 %v1248
    %1502 = vmatprep.subr.mxu0 0.0
    %1503 = vmatpush1.msra.mxu0 %v1249
    %1504 = vmatprep.subr.mxu0 0.0
    %1505 = vmatpush1.msra.mxu0 %v1250
    %1506 = vmatprep.subr.mxu0 0.0
    %1507 = vmatpush1.msra.mxu0 %v1251
    %1508 = vmatprep.subr.mxu0 0.0
    %1509 = vmatpush1.msra.mxu0 %v1252
    %1510 = vmatprep.subr.mxu0 0.0
    %1511 = vmatpush1.msra.mxu0 %v1253
    %1512 = vmatprep.subr.mxu0 0.0
    %1513 = vmatpush1.msra.mxu0 %v1254
    %1514 = vmatprep.mubr.f32.mxu0 %v1441
    %1515 = vmatmul.mubr.f32.gmra.mrb[0].mxu0 %v1440
    %v1516 = vpop.f32.mrb[0].mxu0
    %v1517 = vadd.f32 %v1449, %v1516
    %v1518 = vpop.f32.mrb[0].mxu0
    %1519 = vdwg.mxu0
    %1520 = vmatprep.subr.mxu0 0.0
    %1521 = vmatpush1.msra.mxu0 %v1255
    %1522 = vmatprep.subr.mxu0 0.0
    %1523 = vmatpush1.msra.mxu0 %v1256
    %1524 = vmatprep.subr.mxu0 0.0
    %1525 = vmatpush1.msra.mxu0 %v1257
    %1526 = vmatprep.subr.mxu0 0.0
    %1527 = vmatpush1.msra.mxu0 %v1258
    %1528 = vmatprep.subr.mxu0 0.0
    %1529 = vmatpush1.msra.mxu0 %v1259
    %1530 = vmatprep.subr.mxu0 0.0
    %1531 = vmatpush1.msra.mxu0 %v1260
    %1532 = vmatprep.subr.mxu0 0.0
    %1533 = vmatpush1.msra.mxu0 %v1261
    %1534 = vmatprep.subr.mxu0 0.0
    %1535 = vmatpush1.msra.mxu0 %v1262
    %1536 = vmatprep.subr.mxu0 0.0
    %1537 = vmatpush1.msra.mxu0 %v1263
    %1538 = vmatprep.subr.mxu0 0.0
    %1539 = vmatpush1.msra.mxu0 %v1264
    %1540 = vmatprep.subr.mxu0 0.0
    %1541 = vmatpush1.msra.mxu0 %v1265
    %1542 = vmatprep.subr.mxu0 0.0
    %1543 = vmatpush1.msra.mxu0 %v1266
    %1544 = vmatprep.subr.mxu0 0.0
    %1545 = vmatpush1.msra.mxu0 %v1267
    %1546 = vmatprep.subr.mxu0 0.0
    %1547 = vmatpush1.msra.mxu0 %v1268
    %1548 = vmatprep.subr.mxu0 0.0
    %1549 = vmatpush1.msra.mxu0 %v1269
    %1550 = vmatprep.subr.mxu0 0.0
    %1551 = vmatpush1.msra.mxu0 %v1270
    %1552 = vmatprep.subr.mxu0 0.0
    %1553 = vmatpush1.msra.mxu0 %v1271
    %1554 = vmatprep.subr.mxu0 0.0
    %1555 = vmatpush1.msra.mxu0 %v1272
    %1556 = vmatprep.subr.mxu0 0.0
    %1557 = vmatpush1.msra.mxu0 %v1273
    %1558 = vmatprep.subr.mxu0 0.0
    %1559 = vmatpush1.msra.mxu0 %v1274
    %1560 = vmatprep.subr.mxu0 0.0
    %1561 = vmatpush1.msra.mxu0 %v1275
    %1562 = vmatprep.subr.mxu0 0.0
    %1563 = vmatpush1.msra.mxu0 %v1276
    %1564 = vmatprep.subr.mxu0 0.0
    %1565 = vmatpush1.msra.mxu0 %v1277
    %1566 = vmatprep.subr.mxu0 0.0
    %1567 = vmatpush1.msra.mxu0 %v1278
    %1568 = vmatprep.subr.mxu0 0.0
    %1569 = vmatpush1.msra.mxu0 %v1279
    %1570 = vmatprep.subr.mxu0 0.0
    %1571 = vmatpush1.msra.mxu0 %v1280
    %1572 = vmatprep.subr.mxu0 0.0
    %1573 = vmatpush1.msra.mxu0 %v1281
    %1574 = vmatprep.subr.mxu0 0.0
    %1575 = vmatpush1.msra.mxu0 %v1282
    %1576 = vmatprep.subr.mxu0 0.0
    %1577 = vmatpush1.msra.mxu0 %v1283
    %1578 = vmatprep.subr.mxu0 0.0
    %1579 = vmatpush1.msra.mxu0 %v1284
    %1580 = vmatprep.subr.mxu0 0.0
    %1581 = vmatpush1.msra.mxu0 %v1285
    %1582 = vmatprep.subr.mxu0 0.0
    %1583 = vmatpush1.msra.mxu0 %v1286
    %1584 = vmatprep.mubr.f32.mxu0 %v1443
    %1585 = vmatmul.mubr.f32.gmra.mrb[0].mxu0 %v1442
    %v1586 = vpop.f32.mrb[0].mxu0
    %v1587 = vadd.f32 %v1517, %v1586
    %v1588 = vpop.f32.mrb[0].mxu0
    %1589 = vdwg.mxu0
    %1590 = vmatprep.subr.mxu0 0.0
    %1591 = vmatpush1.msra.mxu0 %v1287
    %1592 = vmatprep.subr.mxu0 0.0
    %1593 = vmatpush1.msra.mxu0 %v1288
    %1594 = vmatprep.subr.mxu0 0.0
    %1595 = vmatpush1.msra.mxu0 %v1289
    %1596 = vmatprep.subr.mxu0 0.0
    %1597 = vmatpush1.msra.mxu0 %v1290
    %1598 = vmatprep.subr.mxu0 0.0
    %1599 = vmatpush1.msra.mxu0 %v1291
    %1600 = vmatprep.subr.mxu0 0.0
    %1601 = vmatpush1.msra.mxu0 %v1292
    %1602 = vmatprep.subr.mxu0 0.0
    %1603 = vmatpush1.msra.mxu0 %v1293
    %1604 = vmatprep.subr.mxu0 0.0
    %1605 = vmatpush1.msra.mxu0 %v1294
    %1606 = vmatprep.subr.mxu0 0.0
    %1607 = vmatpush1.msra.mxu0 %v1295
    %1608 = vmatprep.subr.mxu0 0.0
    %1609 = vmatpush1.msra.mxu0 %v1296
    %1610 = vmatprep.subr.mxu0 0.0
    %1611 = vmatpush1.msra.mxu0 %v1297
    %1612 = vmatprep.subr.mxu0 0.0
    %1613 = vmatpush1.msra.mxu0 %v1298
    %1614 = vmatprep.subr.mxu0 0.0
    %1615 = vmatpush1.msra.mxu0 %v1299
    %1616 = vmatprep.subr.mxu0 0.0
    %1617 = vmatpush1.msra.mxu0 %v1300
    %1618 = vmatprep.subr.mxu0 0.0
    %1619 = vmatpush1.msra.mxu0 %v1301
    %1620 = vmatprep.subr.mxu0 0.0
    %1621 = vmatpush1.msra.mxu0 %v1302
    %1622 = vmatprep.subr.mxu0 0.0
    %1623 = vmatpush1.msra.mxu0 %v1303
    %1624 = vmatprep.subr.mxu0 0.0
    %1625 = vmatpush1.msra.mxu0 %v1304
    %1626 = vmatprep.subr.mxu0 0.0
    %1627 = vmatpush1.msra.mxu0 %v1305
    %1628 = vmatprep.subr.mxu0 0.0
    %1629 = vmatpush1.msra.mxu0 %v1306
    %1630 = vmatprep.subr.mxu0 0.0
    %1631 = vmatpush1.msra.mxu0 %v1307
    %1632 = vmatprep.subr.mxu0 0.0
    %1633 = vmatpush1.msra.mxu0 %v1308
    %1634 = vmatprep.subr.mxu0 0.0
    %1635 = vmatpush1.msra.mxu0 %v1309
    %1636 = vmatprep.subr.mxu0 0.0
    %1637 = vmatpush1.msra.mxu0 %v1310
    %1638 = vmatprep.subr.mxu0 0.0
    %1639 = vmatpush1.msra.mxu0 %v1311
    %1640 = vmatprep.subr.mxu0 0.0
    %1641 = vmatpush1.msra.mxu0 %v1312
    %1642 = vmatprep.subr.mxu0 0.0
    %1643 = vmatpush1.msra.mxu0 %v1313
    %1644 = vmatprep.subr.mxu0 0.0
    %1645 = vmatpush1.msra.mxu0 %v1314
    %1646 = vmatprep.subr.mxu0 0.0
    %1647 = vmatpush1.msra.mxu0 %v1315
    %1648 = vmatprep.subr.mxu0 0.0
    %1649 = vmatpush1.msra.mxu0 %v1316
    %1650 = vmatprep.subr.mxu0 0.0
    %1651 = vmatpush1.msra.mxu0 %v1317
    %1652 = vmatprep.subr.mxu0 0.0
    %1653 = vmatpush1.msra.mxu0 %v1318
    %1654 = vmatprep.mubr.f32.mxu0 %v1445
    %1655 = vmatmul.mubr.f32.gmra.mrb[0].mxu0 %v1444
    %v1656 = vpop.f32.mrb[0].mxu0
    %v1657 = vadd.f32 %v1587, %v1656
    %v1658 = vpop.f32.mrb[0].mxu0
    %1659 = vdwg.mxu0
    %1660 = vst [vmem:[#allocation10] sm:$0xff] %v1657
    // Predicated region
    $region34: #{tpu_custom_call.1} parent=1 // pred_check
      _
    $region35: #{tpu_custom_call.1} parent=1 // pred_check_branch
      %1662 = sbr.rel (0) target = $region37
    $region36: #{tpu_custom_call.1} parent=1 // pred_region
      %s1664 = ssub.s32 128, 128
      %1665 = vsyncadd [#allocation4], %s1664
      %s1667 = sshll.u32 [#allocation10], 4
      %s1668 = int_to_ptr.vmem [resolvable:$true] %s1667
      %1670 = dma.vmem_to_hbm [thread:$0]  %s1668, 128, %s4, [#allocation4]
    $region37: #{tpu_custom_call.1} parent=1 // pred_fallthru
      _
    // Predicated region
    $region38: #{tpu_custom_call.1} parent=1 // pred_check
      _
    $region39: #{tpu_custom_call.1} parent=1 // pred_check_branch
      %1672 = sbr.rel (0) target = $region41
    $region40: #{tpu_custom_call.1} parent=1 // pred_region
      %1673 = dma.done [#allocation4], 128
    $region41: #{tpu_custom_call.1} parent=1 // pred_fallthru
      _
    %1674 = vsyncpa [#allocation3], 1
    %1675 = vsyncpa [#allocation6], 1
    %1676 = vsyncpa [#allocation9], 1
    %1677 = vsyncpa [#allocation4], 1

</llo_original>
